<compile_context>
chip_gen: v7x
topology: tpu7x:2x2x1
jax: 0.10.0
libtpu: 0.0.40
codegen_flags: <defaults>
</compile_context>

<pallas_src>
import functools

import jax
import jax.numpy as jnp
from jax.experimental import pallas as pl
from jax.experimental.pallas import tpu as pltpu


LANE = 128


def _round_up(x, m):
    return ((x + m - 1) // m) * m


# ----------------------------- kernel helpers -------------------------------

def _gelu_tanh(x):
    # tanh approximation -> lowers to EUP (its own VLIW slot).
    c = 0.7978845608028654  # sqrt(2/pi)
    return 0.5 * x * (1.0 + jnp.tanh(c * (x + 0.044715 * x * x * x)))


def _layernorm(x, w, b, eps=1e-5):
    mu = jnp.mean(x, axis=-1, keepdims=True)
    var = jnp.mean(jnp.square(x - mu), axis=-1, keepdims=True)
    return (x - mu) * jax.lax.rsqrt(var + eps) * w + b


# --------------------------------- kernel -----------------------------------

def diffusion_policy_kernel(
    # packed input slab (per batch tile): [obs | act | timestep | 0-pad], bf16
    x_ref,
    # weights (bf16)
    in_w_ref,        # (IN_PAD, 2H): [enc_w1(padded) | proj_w for act/timestep]
    enc_w2_ref,      # (H, H)
    proj_wh_ref,     # (H, H)
    attn_w_ref,      # (L, H, H)  fused Wv @ Wo
    ff1_w_ref,       # (L, H, 4H)
    ff2_w_ref,       # (L, 4H, H)
    out_w_ref,       # (H, AH_PAD)
    # packed small vectors (f32)
    layer_vecs_ref,  # (L, 8, H): [attn_b(fused), ln1_w, ln1_b, ff2_b, ln2_w, ln2_b, 0, 0]
    ff1_b_ref,       # (L, 1, 4H)
    glob_vecs_ref,   # (3, H): [enc_b1, enc_b2, proj_b]
    out_b_ref,       # (1, AH_PAD)
    # output (f32, lane-dense padded)
    out_ref,
    *, n_layers, hidden_dim):
    f32 = jnp.float32
    bf16 = jnp.bfloat16
    H = hidden_dim

    def bdot(a, w_bf16):
        # bf16 MXU path, f32 accumulation.
        return jnp.dot(a.astype(bf16), w_bf16, preferred_element_type=f32)

    x_in = x_ref[...]                      # bf16 (Bt, IN_PAD)
    gv = glob_vecs_ref[...]                # f32 (3, H)
    enc_b1, enc_b2, proj_b = gv[0:1, :], gv[1:2, :], gv[2:3, :]

    # --- one 2H-wide GEMM over the packed input slab -------------------------
    #   columns 0:H   -> obs_encoder first-layer pre-activation
    #   columns H:2H  -> input_proj contribution of (noisy_action_seq, timestep)
    y = jnp.dot(x_in, in_w_ref[...], preferred_element_type=f32)   # (Bt, 2H)

    # --- obs_encoder: Linear -> GELU -> Linear -> GELU ---
    h = _gelu_tanh(y[:, :H] + enc_b1)
    h = _gelu_tanh(bdot(h, enc_w2_ref[...]) + enc_b2)

    # --- input_proj(cat([obs_feat, noisy_action_seq, timestep])) ---
    x = bdot(h, proj_wh_ref[...]) + y[:, H:2 * H] + proj_b          # f32 (Bt, H)

    # --- TransformerEncoder (post-norm, seq_len == 1, eval mode) ---
    for l in range(n_layers):               # static unrolled loop
        lv = layer_vecs_ref[l]               # (8, H) f32
        attn_b, ln1_w, ln1_b = lv[0:1], lv[1:2], lv[2:3]
        ff2_b, ln2_w, ln2_b = lv[3:4], lv[4:5], lv[5:6]

        # attention over one token == fused (Wv @ Wo) projection only.
        attn = bdot(x, attn_w_ref[l]) + attn_b
        x = _layernorm(x + attn, ln1_w, ln1_b)

        # FFN: keep the (Bt, 4H) intermediate in bf16 (bias add + GELU), feed
        # bf16 straight into the ff2 GEMM.  Residual stays f32.
        ff_h = _gelu_tanh((bdot(x, ff1_w_ref[l]) + ff1_b_ref[l]).astype(bf16))
        ff = jnp.dot(ff_h, ff2_w_ref[l], preferred_element_type=f32) + ff2_b
        x = _layernorm(x + ff, ln2_w, ln2_b)

    # --- output_proj (lane-dense padded) ---
    out_ref[...] = bdot(x, out_w_ref[...]) + out_b_ref[...]


# ------------------------------ param handling --------------------------------

# Weight matrices the kernel consumes in bf16 *individually* (used to round the
# reference the same way).  attn_in_w / attn_out_w are fused in f32 and rounded
# once, so they stay f32 in the reference.
WEIGHT_KEYS = {"enc_w1", "enc_w2", "proj_w_h", "proj_w_a", "proj_w_t",
               "ff1_w", "ff2_w", "out_w"}

# Order of packed kernel params (after pack_params) == kernel arg order.
KERNEL_PARAM_ORDER = [
    "in_w", "enc_w2", "proj_wh", "attn_w", "ff1_w", "ff2_w", "out_w",
    "layer_vecs", "ff1_b", "glob_vecs", "out_b",
]


def make_params(key, obs_dim, action_dim, horizon, hidden_dim, n_layers):
    """Deterministic synthetic parameters (shapes mirror the nn.Module)."""
    H, AH, L = hidden_dim, action_dim * horizon, n_layers
    keys = iter(jax.random.split(key, 32))

    def w(shape, scale=0.05):
        return scale * jax.random.normal(next(keys), shape, jnp.float32)

    return dict(
        enc_w1=w((obs_dim, H)), enc_b1=w((1, H)),
        enc_w2=w((H, H)), enc_b2=w((1, H)),
        proj_w_h=w((H, H)), proj_w_a=w((AH, H)), proj_w_t=w((1, H)),
        proj_b=w((1, H)),
        # PyTorch nn.MultiheadAttention packs in_proj as [Wq; Wk; Wv];
        # after transposition V occupies columns 2H:3H.
        attn_in_w=w((L, H, 3 * H)), attn_in_b=w((L, 1, 3 * H)),
        attn_out_w=w((L, H, H)), attn_out_b=w((L, 1, H)),
        ln1_w=jnp.ones((L, 1, H), jnp.float32) + w((L, 1, H), 0.01),
        ln1_b=w((L, 1, H)),
        ff1_w=w((L, H, 4 * H)), ff1_b=w((L, 1, 4 * H)),
        ff2_w=w((L, 4 * H, H)), ff2_b=w((L, 1, H)),
        ln2_w=jnp.ones((L, 1, H), jnp.float32) + w((L, 1, H), 0.01),
        ln2_b=w((L, 1, H)),
        out_w=w((H, AH)), out_b=w((1, AH)),
    )


def pack_params(p, obs_dim, AH, H, L):
    """Pack natural params into the lane-dense / bf16 layout the kernel expects.

    Called ONCE (from build_forward); the packed pytree is reused across calls.
    """
    IN_PAD = _round_up(obs_dim + AH + 1, LANE)
    AH_PAD = _round_up(AH, LANE)
    bf16 = jnp.bfloat16
    f32 = jnp.float32

    # obs-encoder first layer, extended to the padded input slab (zero rows
    # for the act / timestep / padding columns).
    enc_w1_pad = jnp.zeros((IN_PAD, H), f32).at[:obs_dim].set(p["enc_w1"])

    # input_proj weight for the (act, timestep) part of the slab.
    proj_wr = jnp.zeros((IN_PAD, H), f32)
    proj_wr = proj_wr.at[obs_dim:obs_dim + AH].set(p["proj_w_a"])
    proj_wr = proj_wr.at[obs_dim + AH].set(p["proj_w_t"][0])

    # Single (IN_PAD, 2H) weight: one 256-wide GEMM fills the v6e/v7x MXU.
    in_w = jnp.concatenate([enc_w1_pad, proj_wr], axis=1).astype(bf16)

    # Fuse the (purely linear, seq_len == 1) attention V and O projections.
    # Product and folded bias computed in f32, rounded to bf16 once.
    w_v = p["attn_in_w"][:, :, 2 * H:3 * H]                          # (L, H, H)
    b_v = p["attn_in_b"][:, :, 2 * H:3 * H]                          # (L, 1, H)
    w_o = p["attn_out_w"]                                            # (L, H, H)
    attn_w = jnp.einsum("lij,ljk->lik", w_v, w_o).astype(bf16)       # (L, H, H)
    attn_b = jnp.einsum("lij,ljk->lik", b_v, w_o) + p["attn_out_b"]  # (L, 1, H) f32

    # Lane-dense padded output projection.
    out_w_p = (jnp.zeros((H, AH_PAD), f32).at[:, :AH].set(p["out_w"])).astype(bf16)
    out_b_p = jnp.zeros((1, AH_PAD), f32).at[:, :AH].set(p["out_b"])

    # Pack per-layer (1, H) vectors into one (L, 8, H) slab.
    layer_vecs = jnp.concatenate(
        [attn_b, p["ln1_w"], p["ln1_b"], p["ff2_b"], p["ln2_w"], p["ln2_b"],
         jnp.zeros((L, 2, H), f32)], axis=1)                          # (L, 8, H)

    glob_vecs = jnp.concatenate([p["enc_b1"], p["enc_b2"], p["proj_b"]], axis=0)  # (3, H)

    kp = dict(
        in_w=in_w, enc_w2=p["enc_w2"].astype(bf16),
        proj_wh=p["proj_w_h"].astype(bf16),
        attn_w=attn_w, ff1_w=p["ff1_w"].astype(bf16), ff2_w=p["ff2_w"].astype(bf16),
        out_w=out_w_p,
        layer_vecs=layer_vecs, ff1_b=p["ff1_b"], glob_vecs=glob_vecs, out_b=out_b_p,
    )
    return kp, IN_PAD, AH_PAD


# ------------------------------ wrapper / glue -------------------------------

def build_forward(params, *, obs_dim, action_dim, horizon, hidden_dim, n_layers,
                  batch_tile=None):
    """Pack weights once, return a jitted forward(obs, act, t) -> (B, AH)."""
    H, L = hidden_dim, n_layers
    AH = action_dim * horizon
    kp, IN_PAD, AH_PAD = pack_params(params, obs_dim, AH, H, L)
    packed = [kp[n] for n in KERNEL_PARAM_ORDER]
    weight_bytes = sum(int(a.size) * a.dtype.itemsize for a in packed)

    kernel = functools.partial(diffusion_policy_kernel,
                               n_layers=n_layers, hidden_dim=H)

    @jax.jit
    def forward(obs, noisy_action_seq, timestep):
        B = obs.shape[0]

        # --- batch tiling heuristic (B is static under jit) ---
        bt = batch_tile
        if bt is None:
            if B >= 256:
                # Give the megacore "parallel" axis >= 2 steps (v7x: 2 TCs).
                bt = _round_up(pl.cdiv(B, 2), 16)
            else:
                # One big tile: weight DMA dominates, don't duplicate it.
                bt = min(_round_up(B, 16), 256)
        bt = _round_up(bt, 16)              # bf16: 16 sublanes per vreg
        B_pad = _round_up(B, bt)
        grid = (B_pad // bt,)

        # --- lane-dense packed input slab: [obs | act | t | zeros], bf16 ---
        x_cat = jnp.concatenate([obs, noisy_action_seq, timestep], axis=1)
        x_in = jnp.pad(x_cat, ((0, B_pad - B), (0, IN_PAD - x_cat.shape[1])))
        x_in = x_in.astype(jnp.bfloat16)

        def weight_spec(arr):
            nd = arr.ndim
            # Weights never change block index.  (When scaling H/L up, add
            # pipeline_mode=pl.Buffered(1) here to drop their double-buffering.)
            return pl.BlockSpec(arr.shape, lambda i, _nd=nd: (0,) * _nd)

        in_specs = ([pl.BlockSpec((bt, IN_PAD), lambda i: (i, 0))]
                    + [weight_spec(a) for a in packed])
        out_spec = pl.BlockSpec((bt, AH_PAD), lambda i: (i, 0))

        # Explicit VMEM budget from the packed footprint (weights are
        # double-buffered by default) + I/O tiles + activation headroom.
        vmem_limit = (2 * weight_bytes
                      + 2 * bt * IN_PAD * 2 + 2 * bt * AH_PAD * 4
                      + 8 * bt * 4 * H * 4
                      + (4 << 20))
        vmem_limit = int(min(max(vmem_limit, 16 << 20), 64 << 20))

        # Advisory cost estimate so XLA does not treat the call as zero-cost.
        flops = int(2 * B_pad * (IN_PAD * 2 * H + 2 * H * H
                                 + L * 9 * H * H + H * AH_PAD))
        transcendentals = int(B_pad * (2 * H + L * 4 * H))
        bytes_accessed = int(x_in.size * 2 + weight_bytes + B_pad * AH_PAD * 4)
        cost = pl.CostEstimate(flops=flops, transcendentals=transcendentals,
                               bytes_accessed=bytes_accessed)

        out_padded = pl.pallas_call(
            kernel,
            out_shape=jax.ShapeDtypeStruct((B_pad, AH_PAD), jnp.float32),
            grid_spec=pltpu.PrefetchScalarGridSpec(
                num_scalar_prefetch=0,
                grid=grid,
                in_specs=in_specs,
                out_specs=out_spec,
            ),
            compiler_params=pltpu.CompilerParams(
                dimension_semantics=("parallel",),
                vmem_limit_bytes=vmem_limit),
            cost_estimate=cost,
        )(x_in, *packed)

        # Drop batch padding and output lane padding.
        return out_padded[:B, :AH]

    return forward


# -------------------------- pure-JAX reference -------------------------------

def reference_forward(obs, act, t, params, hidden_dim, n_layers):
    """Faithful f32 reference (erf GELU, unfused qkv path with V slice)."""
    H, p = hidden_dim, params

    def gelu(x):  # exact erf GELU, as nn.GELU()
        return 0.5 * x * (1.0 + jax.lax.erf(x * 0.7071067811865476))

    def ln(x, w, b, eps=1e-5):
        mu = x.mean(-1, keepdims=True)
        var = ((x - mu) ** 2).mean(-1, keepdims=True)
        return (x - mu) / jnp.sqrt(var + eps) * w + b

    h = gelu(obs @ p["enc_w1"] + p["enc_b1"])
    h = gelu(h @ p["enc_w2"] + p["enc_b2"])
    x = h @ p["proj_w_h"] + act @ p["proj_w_a"] + t * p["proj_w_t"] + p["proj_b"]
    for l in range(n_layers):
        qkv = x @ p["attn_in_w"][l] + p["attn_in_b"][l]
        v = qkv[:, 2 * H:3 * H]            # softmax over 1 key position == 1
        attn = v @ p["attn_out_w"][l] + p["attn_out_b"][l]
        x = ln(x + attn, p["ln1_w"][l], p["ln1_b"][l])
        ff = gelu(x @ p["ff1_w"][l] + p["ff1_b"][l]) @ p["ff2_w"][l] + p["ff2_b"][l]
        x = ln(x + ff, p["ln2_w"][l], p["ln2_b"][l])
    return x @ p["out_w"] + p["out_b"]


def _bf16_round(x):
    return x.astype(jnp.bfloat16).astype(jnp.float32)


# ----------------------------------- main ------------------------------------

if __name__ == "__main__":
    obs_dim, action_dim, horizon = 6, 2, 4
    hidden_dim, n_layers = 128, 2          # matches the module's default d_model
    batch = 16
    AH = action_dim * horizon

    key = jax.random.PRNGKey(0)
    kpar, ko, ka, kt = jax.random.split(key, 4)

    params = make_params(kpar, obs_dim, action_dim, horizon, hidden_dim, n_layers)
    obs = jax.random.normal(ko, (batch, obs_dim), jnp.float32)
    noisy_action_seq = jax.random.normal(ka, (batch, AH), jnp.float32)
    timestep = jax.random.uniform(kt, (batch, 1), jnp.float32)

    # Pack weights ONCE; reuse the jitted forward across calls (denoise loop).
    forward = build_forward(params, obs_dim=obs_dim, action_dim=action_dim,
                            horizon=horizon, hidden_dim=hidden_dim,
                            n_layers=n_layers)

    out = jax.block_until_ready(forward(obs, noisy_action_seq, timestep))
    out2 = jax.block_until_ready(forward(obs, noisy_action_seq, timestep))

    # Reference with the same bf16-rounded weights/inputs that the kernel uses
    # (kernel runs the bf16 MXU path with f32 accumulation + tanh GELU + a
    # single bf16 rounding of the fused Wv@Wo product, so the tolerance is
    # relaxed vs. a pure-f32/erf comparison).
    ref_params = {k: (_bf16_round(v) if k in WEIGHT_KEYS else v)
                  for k, v in params.items()}
    ref = reference_forward(_bf16_round(obs), _bf16_round(noisy_action_seq),
                            _bf16_round(timestep), ref_params,
                            hidden_dim, n_layers)

    assert out.shape == (batch, AH)
    assert jnp.allclose(out, out2), "forward is not deterministic across calls"
    max_err = float(jnp.max(jnp.abs(out - ref)))
    assert jnp.allclose(out, ref, atol=2e-2, rtol=2e-2), \
        f"mismatch vs reference (max abs err {max_err})"
    print("KERNEL_OK")
</pallas_src>

<mosaic_0001>
module attributes {stable_mosaic.version = 11 : i64} {
  func.func @diffusion_policy_kernel(%arg0: i32, %arg1: memref<16x128xbf16, #tpu.memory_space<vmem>>, %arg2: memref<128x256xbf16, #tpu.memory_space<vmem>>, %arg3: memref<128x128xbf16, #tpu.memory_space<vmem>>, %arg4: memref<128x128xbf16, #tpu.memory_space<vmem>>, %arg5: memref<2x128x128xbf16, #tpu.memory_space<vmem>>, %arg6: memref<2x128x512xbf16, #tpu.memory_space<vmem>>, %arg7: memref<2x512x128xbf16, #tpu.memory_space<vmem>>, %arg8: memref<128x128xbf16, #tpu.memory_space<vmem>>, %arg9: memref<2x8x128xf32, #tpu.memory_space<vmem>>, %arg10: memref<2x1x512xf32, #tpu.memory_space<vmem>>, %arg11: memref<3x128xf32, #tpu.memory_space<vmem>>, %arg12: memref<1x128xf32, #tpu.memory_space<vmem>>, %arg13: memref<16x128xf32, #tpu.memory_space<vmem>>) attributes {dimension_semantics = [#tpu.dimension_semantics<parallel>], iteration_bounds = array<i64: 1>, scalar_prefetch = 0 : i64, scratch_operands = 0 : i64, tpu.core_type = #tpu.core_type<tc>, window_params = [{transform_indices = @transform_0, window_bounds = array<i64: 16, 128>}, {pipeline_mode = #tpu.pipeline_mode<synchronous>, transform_indices = @transform_1, window_bounds = array<i64: 128, 256>}, {pipeline_mode = #tpu.pipeline_mode<synchronous>, transform_indices = @transform_2, window_bounds = array<i64: 128, 128>}, {pipeline_mode = #tpu.pipeline_mode<synchronous>, transform_indices = @transform_3, window_bounds = array<i64: 128, 128>}, {pipeline_mode = #tpu.pipeline_mode<synchronous>, transform_indices = @transform_4, window_bounds = array<i64: 2, 128, 128>}, {pipeline_mode = #tpu.pipeline_mode<synchronous>, transform_indices = @transform_5, window_bounds = array<i64: 2, 128, 512>}, {pipeline_mode = #tpu.pipeline_mode<synchronous>, transform_indices = @transform_6, window_bounds = array<i64: 2, 512, 128>}, {pipeline_mode = #tpu.pipeline_mode<synchronous>, transform_indices = @transform_7, window_bounds = array<i64: 128, 128>}, {pipeline_mode = #tpu.pipeline_mode<synchronous>, transform_indices = @transform_8, window_bounds = array<i64: 2, 8, 128>}, {pipeline_mode = #tpu.pipeline_mode<synchronous>, transform_indices = @transform_9, window_bounds = array<i64: 2, 1, 512>}, {pipeline_mode = #tpu.pipeline_mode<synchronous>, transform_indices = @transform_10, window_bounds = array<i64: 3, 128>}, {pipeline_mode = #tpu.pipeline_mode<synchronous>, transform_indices = @transform_11, window_bounds = array<i64: 1, 128>}, {transform_indices = @transform_12, window_bounds = array<i64: 16, 128>}]} {
    %c0 = arith.constant 0 : index
    %c0_0 = arith.constant 0 : index
    %0 = vector.load %arg1[%c0, %c0_0] : memref<16x128xbf16, #tpu.memory_space<vmem>>, vector<16x128xbf16>
    %c0_1 = arith.constant 0 : index
    %c0_2 = arith.constant 0 : index
    %1 = vector.load %arg11[%c0_1, %c0_2] : memref<3x128xf32, #tpu.memory_space<vmem>>, vector<3x128xf32>
    %2 = vector.extract_strided_slice %1 {offsets = [0, 0], sizes = [1, 128], strides = [1, 1]} : vector<3x128xf32> to vector<1x128xf32>
    %3 = vector.extract_strided_slice %1 {offsets = [1, 0], sizes = [1, 128], strides = [1, 1]} : vector<3x128xf32> to vector<1x128xf32>
    %4 = vector.extract_strided_slice %1 {offsets = [2, 0], sizes = [1, 128], strides = [1, 1]} : vector<3x128xf32> to vector<1x128xf32>
    %c0_3 = arith.constant 0 : index
    %c0_4 = arith.constant 0 : index
    %5 = vector.load %arg2[%c0_3, %c0_4] : memref<128x256xbf16, #tpu.memory_space<vmem>>, vector<128x256xbf16>
    %cst = arith.constant dense<0.000000e+00> : vector<16x256xf32>
    %6 = tpu.matmul %0, %5, %cst {dimension_numbers = #tpu.dot_dimension_numbers<[1], [0], [0], [1], [0, 0, 1, 1], [], []>} : vector<16x128xbf16>, vector<128x256xbf16>, vector<16x256xf32> -> vector<16x256xf32>
    %7 = vector.extract_strided_slice %6 {offsets = [0, 0], sizes = [16, 128], strides = [1, 1]} : vector<16x256xf32> to vector<16x128xf32>
    %8 = vector.broadcast %2 : vector<1x128xf32> to vector<16x128xf32>
    %9 = arith.addf %7, %8 : vector<16x128xf32>
    %cst_5 = arith.constant 5.000000e-01 : f32
    %10 = vector.broadcast %cst_5 : f32 to vector<16x128xf32>
    %11 = arith.mulf %10, %9 : vector<16x128xf32>
    %cst_6 = arith.constant 4.471500e-02 : f32
    %12 = vector.broadcast %cst_6 : f32 to vector<16x128xf32>
    %13 = arith.mulf %12, %9 : vector<16x128xf32>
    %14 = arith.mulf %13, %9 : vector<16x128xf32>
    %15 = arith.mulf %14, %9 : vector<16x128xf32>
    %16 = arith.addf %9, %15 : vector<16x128xf32>
    %cst_7 = arith.constant 0.797884583 : f32
    %17 = vector.broadcast %cst_7 : f32 to vector<16x128xf32>
    %18 = arith.mulf %17, %16 : vector<16x128xf32>
    %19 = math.tanh %18 : vector<16x128xf32>
    %cst_8 = arith.constant 1.000000e+00 : f32
    %20 = vector.broadcast %cst_8 : f32 to vector<16x128xf32>
    %21 = arith.addf %20, %19 : vector<16x128xf32>
    %22 = arith.mulf %11, %21 : vector<16x128xf32>
    %c0_9 = arith.constant 0 : index
    %c0_10 = arith.constant 0 : index
    %23 = vector.load %arg3[%c0_9, %c0_10] : memref<128x128xbf16, #tpu.memory_space<vmem>>, vector<128x128xbf16>
    %24 = arith.truncf %22 : vector<16x128xf32> to vector<16x128xbf16>
    %cst_11 = arith.constant dense<0.000000e+00> : vector<16x128xf32>
    %25 = tpu.matmul %24, %23, %cst_11 {dimension_numbers = #tpu.dot_dimension_numbers<[1], [0], [0], [1], [0, 0, 1, 1], [], []>} : vector<16x128xbf16>, vector<128x128xbf16>, vector<16x128xf32> -> vector<16x128xf32>
    %26 = vector.broadcast %3 : vector<1x128xf32> to vector<16x128xf32>
    %27 = arith.addf %25, %26 : vector<16x128xf32>
    %cst_12 = arith.constant 5.000000e-01 : f32
    %28 = vector.broadcast %cst_12 : f32 to vector<16x128xf32>
    %29 = arith.mulf %28, %27 : vector<16x128xf32>
    %cst_13 = arith.constant 4.471500e-02 : f32
    %30 = vector.broadcast %cst_13 : f32 to vector<16x128xf32>
    %31 = arith.mulf %30, %27 : vector<16x128xf32>
    %32 = arith.mulf %31, %27 : vector<16x128xf32>
    %33 = arith.mulf %32, %27 : vector<16x128xf32>
    %34 = arith.addf %27, %33 : vector<16x128xf32>
    %cst_14 = arith.constant 0.797884583 : f32
    %35 = vector.broadcast %cst_14 : f32 to vector<16x128xf32>
    %36 = arith.mulf %35, %34 : vector<16x128xf32>
    %37 = math.tanh %36 : vector<16x128xf32>
    %cst_15 = arith.constant 1.000000e+00 : f32
    %38 = vector.broadcast %cst_15 : f32 to vector<16x128xf32>
    %39 = arith.addf %38, %37 : vector<16x128xf32>
    %40 = arith.mulf %29, %39 : vector<16x128xf32>
    %c0_16 = arith.constant 0 : index
    %c0_17 = arith.constant 0 : index
    %41 = vector.load %arg4[%c0_16, %c0_17] : memref<128x128xbf16, #tpu.memory_space<vmem>>, vector<128x128xbf16>
    %42 = arith.truncf %40 : vector<16x128xf32> to vector<16x128xbf16>
    %cst_18 = arith.constant dense<0.000000e+00> : vector<16x128xf32>
    %43 = tpu.matmul %42, %41, %cst_18 {dimension_numbers = #tpu.dot_dimension_numbers<[1], [0], [0], [1], [0, 0, 1, 1], [], []>} : vector<16x128xbf16>, vector<128x128xbf16>, vector<16x128xf32> -> vector<16x128xf32>
    %44 = vector.extract_strided_slice %6 {offsets = [0, 128], sizes = [16, 128], strides = [1, 1]} : vector<16x256xf32> to vector<16x128xf32>
    %45 = arith.addf %43, %44 : vector<16x128xf32>
    %46 = vector.broadcast %4 : vector<1x128xf32> to vector<16x128xf32>
    %47 = arith.addf %45, %46 : vector<16x128xf32>
    %c0_19 = arith.constant 0 : index
    %c0_20 = arith.constant 0 : index
    %c0_21 = arith.constant 0 : index
    %48 = vector.load %arg9[%c0_19, %c0_20, %c0_21] : memref<2x8x128xf32, #tpu.memory_space<vmem>>, vector<1x8x128xf32>
    %49 = vector.shape_cast %48 : vector<1x8x128xf32> to vector<8x128xf32>
    %50 = vector.extract_strided_slice %49 {offsets = [0, 0], sizes = [1, 128], strides = [1, 1]} : vector<8x128xf32> to vector<1x128xf32>
    %51 = vector.extract_strided_slice %49 {offsets = [1, 0], sizes = [1, 128], strides = [1, 1]} : vector<8x128xf32> to vector<1x128xf32>
    %52 = vector.extract_strided_slice %49 {offsets = [2, 0], sizes = [1, 128], strides = [1, 1]} : vector<8x128xf32> to vector<1x128xf32>
    %53 = vector.extract_strided_slice %49 {offsets = [3, 0], sizes = [1, 128], strides = [1, 1]} : vector<8x128xf32> to vector<1x128xf32>
    %54 = vector.extract_strided_slice %49 {offsets = [4, 0], sizes = [1, 128], strides = [1, 1]} : vector<8x128xf32> to vector<1x128xf32>
    %55 = vector.extract_strided_slice %49 {offsets = [5, 0], sizes = [1, 128], strides = [1, 1]} : vector<8x128xf32> to vector<1x128xf32>
    %c0_22 = arith.constant 0 : index
    %c0_23 = arith.constant 0 : index
    %c0_24 = arith.constant 0 : index
    %56 = vector.load %arg5[%c0_22, %c0_23, %c0_24] : memref<2x128x128xbf16, #tpu.memory_space<vmem>>, vector<1x128x128xbf16>
    %57 = vector.shape_cast %56 : vector<1x128x128xbf16> to vector<128x128xbf16>
    %58 = arith.truncf %47 : vector<16x128xf32> to vector<16x128xbf16>
    %cst_25 = arith.constant dense<0.000000e+00> : vector<16x128xf32>
    %59 = tpu.matmul %58, %57, %cst_25 {dimension_numbers = #tpu.dot_dimension_numbers<[1], [0], [0], [1], [0, 0, 1, 1], [], []>} : vector<16x128xbf16>, vector<128x128xbf16>, vector<16x128xf32> -> vector<16x128xf32>
    %60 = vector.broadcast %50 : vector<1x128xf32> to vector<16x128xf32>
    %61 = arith.addf %59, %60 : vector<16x128xf32>
    %62 = arith.addf %47, %61 : vector<16x128xf32>
    %cst_26 = arith.constant dense<0.000000e+00> : vector<16xf32>
    %63 = vector.multi_reduction <add>, %62, %cst_26 [1] : vector<16x128xf32> to vector<16xf32>
    %64 = vector.shape_cast %63 : vector<16xf32> to vector<16x1xf32>
    %cst_27 = arith.constant 1.280000e+02 : f32
    %65 = vector.broadcast %cst_27 : f32 to vector<16x1xf32>
    %66 = arith.divf %64, %65 : vector<16x1xf32>
    %67 = vector.broadcast %66 : vector<16x1xf32> to vector<16x128xf32>
    %68 = arith.subf %62, %67 : vector<16x128xf32>
    %69 = arith.mulf %68, %68 : vector<16x128xf32>
    %cst_28 = arith.constant dense<0.000000e+00> : vector<16xf32>
    %70 = vector.multi_reduction <add>, %69, %cst_28 [1] : vector<16x128xf32> to vector<16xf32>
    %71 = vector.shape_cast %70 : vector<16xf32> to vector<16x1xf32>
    %cst_29 = arith.constant 1.280000e+02 : f32
    %72 = vector.broadcast %cst_29 : f32 to vector<16x1xf32>
    %73 = arith.divf %71, %72 : vector<16x1xf32>
    %74 = vector.broadcast %66 : vector<16x1xf32> to vector<16x128xf32>
    %75 = arith.subf %62, %74 : vector<16x128xf32>
    %cst_30 = arith.constant 9.99999974E-6 : f32
    %76 = vector.broadcast %cst_30 : f32 to vector<16x1xf32>
    %77 = arith.addf %73, %76 : vector<16x1xf32>
    %78 = math.rsqrt %77 : vector<16x1xf32>
    %79 = vector.broadcast %78 : vector<16x1xf32> to vector<16x128xf32>
    %80 = arith.mulf %75, %79 : vector<16x128xf32>
    %81 = vector.broadcast %51 : vector<1x128xf32> to vector<16x128xf32>
    %82 = arith.mulf %80, %81 : vector<16x128xf32>
    %83 = vector.broadcast %52 : vector<1x128xf32> to vector<16x128xf32>
    %84 = arith.addf %82, %83 : vector<16x128xf32>
    %c0_31 = arith.constant 0 : index
    %c0_32 = arith.constant 0 : index
    %c0_33 = arith.constant 0 : index
    %85 = vector.load %arg6[%c0_31, %c0_32, %c0_33] : memref<2x128x512xbf16, #tpu.memory_space<vmem>>, vector<1x128x512xbf16>
    %86 = vector.shape_cast %85 : vector<1x128x512xbf16> to vector<128x512xbf16>
    %87 = arith.truncf %84 : vector<16x128xf32> to vector<16x128xbf16>
    %cst_34 = arith.constant dense<0.000000e+00> : vector<16x512xf32>
    %88 = tpu.matmul %87, %86, %cst_34 {dimension_numbers = #tpu.dot_dimension_numbers<[1], [0], [0], [1], [0, 0, 1, 1], [], []>} : vector<16x128xbf16>, vector<128x512xbf16>, vector<16x512xf32> -> vector<16x512xf32>
    %c0_35 = arith.constant 0 : index
    %c0_36 = arith.constant 0 : index
    %c0_37 = arith.constant 0 : index
    %89 = vector.load %arg10[%c0_35, %c0_36, %c0_37] : memref<2x1x512xf32, #tpu.memory_space<vmem>>, vector<1x1x512xf32>
    %90 = vector.shape_cast %89 : vector<1x1x512xf32> to vector<1x512xf32>
    %91 = vector.broadcast %90 : vector<1x512xf32> to vector<16x512xf32>
    %92 = arith.addf %88, %91 : vector<16x512xf32>
    %93 = arith.truncf %92 : vector<16x512xf32> to vector<16x512xbf16>
    %cst_38 = arith.constant 5.000000e-01 : bf16
    %94 = vector.broadcast %cst_38 : bf16 to vector<16x512xbf16>
    %95 = arith.mulf %94, %93 : vector<16x512xbf16>
    %cst_39 = arith.constant 4.467770e-02 : bf16
    %96 = vector.broadcast %cst_39 : bf16 to vector<16x512xbf16>
    %97 = arith.mulf %96, %93 : vector<16x512xbf16>
    %98 = arith.mulf %97, %93 : vector<16x512xbf16>
    %99 = arith.mulf %98, %93 : vector<16x512xbf16>
    %100 = arith.addf %93, %99 : vector<16x512xbf16>
    %cst_40 = arith.constant 7.968750e-01 : bf16
    %101 = vector.broadcast %cst_40 : bf16 to vector<16x512xbf16>
    %102 = arith.mulf %101, %100 : vector<16x512xbf16>
    %103 = math.tanh %102 : vector<16x512xbf16>
    %cst_41 = arith.constant 1.000000e+00 : bf16
    %104 = vector.broadcast %cst_41 : bf16 to vector<16x512xbf16>
    %105 = arith.addf %104, %103 : vector<16x512xbf16>
    %106 = arith.mulf %95, %105 : vector<16x512xbf16>
    %c0_42 = arith.constant 0 : index
    %c0_43 = arith.constant 0 : index
    %c0_44 = arith.constant 0 : index
    %107 = vector.load %arg7[%c0_42, %c0_43, %c0_44] : memref<2x512x128xbf16, #tpu.memory_space<vmem>>, vector<1x512x128xbf16>
    %108 = vector.shape_cast %107 : vector<1x512x128xbf16> to vector<512x128xbf16>
    %cst_45 = arith.constant dense<0.000000e+00> : vector<16x128xf32>
    %109 = tpu.matmul %106, %108, %cst_45 {dimension_numbers = #tpu.dot_dimension_numbers<[1], [0], [0], [1], [0, 0, 1, 1], [], []>} : vector<16x512xbf16>, vector<512x128xbf16>, vector<16x128xf32> -> vector<16x128xf32>
    %110 = vector.broadcast %53 : vector<1x128xf32> to vector<16x128xf32>
    %111 = arith.addf %109, %110 : vector<16x128xf32>
    %112 = arith.addf %84, %111 : vector<16x128xf32>
    %cst_46 = arith.constant dense<0.000000e+00> : vector<16xf32>
    %113 = vector.multi_reduction <add>, %112, %cst_46 [1] : vector<16x128xf32> to vector<16xf32>
    %114 = vector.shape_cast %113 : vector<16xf32> to vector<16x1xf32>
    %cst_47 = arith.constant 1.280000e+02 : f32
    %115 = vector.broadcast %cst_47 : f32 to vector<16x1xf32>
    %116 = arith.divf %114, %115 : vector<16x1xf32>
    %117 = vector.broadcast %116 : vector<16x1xf32> to vector<16x128xf32>
    %118 = arith.subf %112, %117 : vector<16x128xf32>
    %119 = arith.mulf %118, %118 : vector<16x128xf32>
    %cst_48 = arith.constant dense<0.000000e+00> : vector<16xf32>
    %120 = vector.multi_reduction <add>, %119, %cst_48 [1] : vector<16x128xf32> to vector<16xf32>
    %121 = vector.shape_cast %120 : vector<16xf32> to vector<16x1xf32>
    %cst_49 = arith.constant 1.280000e+02 : f32
    %122 = vector.broadcast %cst_49 : f32 to vector<16x1xf32>
    %123 = arith.divf %121, %122 : vector<16x1xf32>
    %124 = vector.broadcast %116 : vector<16x1xf32> to vector<16x128xf32>
    %125 = arith.subf %112, %124 : vector<16x128xf32>
    %cst_50 = arith.constant 9.99999974E-6 : f32
    %126 = vector.broadcast %cst_50 : f32 to vector<16x1xf32>
    %127 = arith.addf %123, %126 : vector<16x1xf32>
    %128 = math.rsqrt %127 : vector<16x1xf32>
    %129 = vector.broadcast %128 : vector<16x1xf32> to vector<16x128xf32>
    %130 = arith.mulf %125, %129 : vector<16x128xf32>
    %131 = vector.broadcast %54 : vector<1x128xf32> to vector<16x128xf32>
    %132 = arith.mulf %130, %131 : vector<16x128xf32>
    %133 = vector.broadcast %55 : vector<1x128xf32> to vector<16x128xf32>
    %134 = arith.addf %132, %133 : vector<16x128xf32>
    %c1 = arith.constant 1 : index
    %c0_51 = arith.constant 0 : index
    %c0_52 = arith.constant 0 : index
    %135 = vector.load %arg9[%c1, %c0_51, %c0_52] : memref<2x8x128xf32, #tpu.memory_space<vmem>>, vector<1x8x128xf32>
    %136 = vector.shape_cast %135 : vector<1x8x128xf32> to vector<8x128xf32>
    %137 = vector.extract_strided_slice %136 {offsets = [0, 0], sizes = [1, 128], strides = [1, 1]} : vector<8x128xf32> to vector<1x128xf32>
    %138 = vector.extract_strided_slice %136 {offsets = [1, 0], sizes = [1, 128], strides = [1, 1]} : vector<8x128xf32> to vector<1x128xf32>
    %139 = vector.extract_strided_slice %136 {offsets = [2, 0], sizes = [1, 128], strides = [1, 1]} : vector<8x128xf32> to vector<1x128xf32>
    %140 = vector.extract_strided_slice %136 {offsets = [3, 0], sizes = [1, 128], strides = [1, 1]} : vector<8x128xf32> to vector<1x128xf32>
    %141 = vector.extract_strided_slice %136 {offsets = [4, 0], sizes = [1, 128], strides = [1, 1]} : vector<8x128xf32> to vector<1x128xf32>
    %142 = vector.extract_strided_slice %136 {offsets = [5, 0], sizes = [1, 128], strides = [1, 1]} : vector<8x128xf32> to vector<1x128xf32>
    %c1_53 = arith.constant 1 : index
    %c0_54 = arith.constant 0 : index
    %c0_55 = arith.constant 0 : index
    %143 = vector.load %arg5[%c1_53, %c0_54, %c0_55] : memref<2x128x128xbf16, #tpu.memory_space<vmem>>, vector<1x128x128xbf16>
    %144 = vector.shape_cast %143 : vector<1x128x128xbf16> to vector<128x128xbf16>
    %145 = arith.truncf %134 : vector<16x128xf32> to vector<16x128xbf16>
    %cst_56 = arith.constant dense<0.000000e+00> : vector<16x128xf32>
    %146 = tpu.matmul %145, %144, %cst_56 {dimension_numbers = #tpu.dot_dimension_numbers<[1], [0], [0], [1], [0, 0, 1, 1], [], []>} : vector<16x128xbf16>, vector<128x128xbf16>, vector<16x128xf32> -> vector<16x128xf32>
    %147 = vector.broadcast %137 : vector<1x128xf32> to vector<16x128xf32>
    %148 = arith.addf %146, %147 : vector<16x128xf32>
    %149 = arith.addf %134, %148 : vector<16x128xf32>
    %cst_57 = arith.constant dense<0.000000e+00> : vector<16xf32>
    %150 = vector.multi_reduction <add>, %149, %cst_57 [1] : vector<16x128xf32> to vector<16xf32>
    %151 = vector.shape_cast %150 : vector<16xf32> to vector<16x1xf32>
    %cst_58 = arith.constant 1.280000e+02 : f32
    %152 = vector.broadcast %cst_58 : f32 to vector<16x1xf32>
    %153 = arith.divf %151, %152 : vector<16x1xf32>
    %154 = vector.broadcast %153 : vector<16x1xf32> to vector<16x128xf32>
    %155 = arith.subf %149, %154 : vector<16x128xf32>
    %156 = arith.mulf %155, %155 : vector<16x128xf32>
    %cst_59 = arith.constant dense<0.000000e+00> : vector<16xf32>
    %157 = vector.multi_reduction <add>, %156, %cst_59 [1] : vector<16x128xf32> to vector<16xf32>
    %158 = vector.shape_cast %157 : vector<16xf32> to vector<16x1xf32>
    %cst_60 = arith.constant 1.280000e+02 : f32
    %159 = vector.broadcast %cst_60 : f32 to vector<16x1xf32>
    %160 = arith.divf %158, %159 : vector<16x1xf32>
    %161 = vector.broadcast %153 : vector<16x1xf32> to vector<16x128xf32>
    %162 = arith.subf %149, %161 : vector<16x128xf32>
    %cst_61 = arith.constant 9.99999974E-6 : f32
    %163 = vector.broadcast %cst_61 : f32 to vector<16x1xf32>
    %164 = arith.addf %160, %163 : vector<16x1xf32>
    %165 = math.rsqrt %164 : vector<16x1xf32>
    %166 = vector.broadcast %165 : vector<16x1xf32> to vector<16x128xf32>
    %167 = arith.mulf %162, %166 : vector<16x128xf32>
    %168 = vector.broadcast %138 : vector<1x128xf32> to vector<16x128xf32>
    %169 = arith.mulf %167, %168 : vector<16x128xf32>
    %170 = vector.broadcast %139 : vector<1x128xf32> to vector<16x128xf32>
    %171 = arith.addf %169, %170 : vector<16x128xf32>
    %c1_62 = arith.constant 1 : index
    %c0_63 = arith.constant 0 : index
    %c0_64 = arith.constant 0 : index
    %172 = vector.load %arg6[%c1_62, %c0_63, %c0_64] : memref<2x128x512xbf16, #tpu.memory_space<vmem>>, vector<1x128x512xbf16>
    %173 = vector.shape_cast %172 : vector<1x128x512xbf16> to vector<128x512xbf16>
    %174 = arith.truncf %171 : vector<16x128xf32> to vector<16x128xbf16>
    %cst_65 = arith.constant dense<0.000000e+00> : vector<16x512xf32>
    %175 = tpu.matmul %174, %173, %cst_65 {dimension_numbers = #tpu.dot_dimension_numbers<[1], [0], [0], [1], [0, 0, 1, 1], [], []>} : vector<16x128xbf16>, vector<128x512xbf16>, vector<16x512xf32> -> vector<16x512xf32>
    %c1_66 = arith.constant 1 : index
    %c0_67 = arith.constant 0 : index
    %c0_68 = arith.constant 0 : index
    %176 = vector.load %arg10[%c1_66, %c0_67, %c0_68] : memref<2x1x512xf32, #tpu.memory_space<vmem>>, vector<1x1x512xf32>
    %177 = vector.shape_cast %176 : vector<1x1x512xf32> to vector<1x512xf32>
    %178 = vector.broadcast %177 : vector<1x512xf32> to vector<16x512xf32>
    %179 = arith.addf %175, %178 : vector<16x512xf32>
    %180 = arith.truncf %179 : vector<16x512xf32> to vector<16x512xbf16>
    %cst_69 = arith.constant 5.000000e-01 : bf16
    %181 = vector.broadcast %cst_69 : bf16 to vector<16x512xbf16>
    %182 = arith.mulf %181, %180 : vector<16x512xbf16>
    %cst_70 = arith.constant 4.467770e-02 : bf16
    %183 = vector.broadcast %cst_70 : bf16 to vector<16x512xbf16>
    %184 = arith.mulf %183, %180 : vector<16x512xbf16>
    %185 = arith.mulf %184, %180 : vector<16x512xbf16>
    %186 = arith.mulf %185, %180 : vector<16x512xbf16>
    %187 = arith.addf %180, %186 : vector<16x512xbf16>
    %cst_71 = arith.constant 7.968750e-01 : bf16
    %188 = vector.broadcast %cst_71 : bf16 to vector<16x512xbf16>
    %189 = arith.mulf %188, %187 : vector<16x512xbf16>
    %190 = math.tanh %189 : vector<16x512xbf16>
    %cst_72 = arith.constant 1.000000e+00 : bf16
    %191 = vector.broadcast %cst_72 : bf16 to vector<16x512xbf16>
    %192 = arith.addf %191, %190 : vector<16x512xbf16>
    %193 = arith.mulf %182, %192 : vector<16x512xbf16>
    %c1_73 = arith.constant 1 : index
    %c0_74 = arith.constant 0 : index
    %c0_75 = arith.constant 0 : index
    %194 = vector.load %arg7[%c1_73, %c0_74, %c0_75] : memref<2x512x128xbf16, #tpu.memory_space<vmem>>, vector<1x512x128xbf16>
    %195 = vector.shape_cast %194 : vector<1x512x128xbf16> to vector<512x128xbf16>
    %cst_76 = arith.constant dense<0.000000e+00> : vector<16x128xf32>
    %196 = tpu.matmul %193, %195, %cst_76 {dimension_numbers = #tpu.dot_dimension_numbers<[1], [0], [0], [1], [0, 0, 1, 1], [], []>} : vector<16x512xbf16>, vector<512x128xbf16>, vector<16x128xf32> -> vector<16x128xf32>
    %197 = vector.broadcast %140 : vector<1x128xf32> to vector<16x128xf32>
    %198 = arith.addf %196, %197 : vector<16x128xf32>
    %199 = arith.addf %171, %198 : vector<16x128xf32>
    %cst_77 = arith.constant dense<0.000000e+00> : vector<16xf32>
    %200 = vector.multi_reduction <add>, %199, %cst_77 [1] : vector<16x128xf32> to vector<16xf32>
    %201 = vector.shape_cast %200 : vector<16xf32> to vector<16x1xf32>
    %cst_78 = arith.constant 1.280000e+02 : f32
    %202 = vector.broadcast %cst_78 : f32 to vector<16x1xf32>
    %203 = arith.divf %201, %202 : vector<16x1xf32>
    %204 = vector.broadcast %203 : vector<16x1xf32> to vector<16x128xf32>
    %205 = arith.subf %199, %204 : vector<16x128xf32>
    %206 = arith.mulf %205, %205 : vector<16x128xf32>
    %cst_79 = arith.constant dense<0.000000e+00> : vector<16xf32>
    %207 = vector.multi_reduction <add>, %206, %cst_79 [1] : vector<16x128xf32> to vector<16xf32>
    %208 = vector.shape_cast %207 : vector<16xf32> to vector<16x1xf32>
    %cst_80 = arith.constant 1.280000e+02 : f32
    %209 = vector.broadcast %cst_80 : f32 to vector<16x1xf32>
    %210 = arith.divf %208, %209 : vector<16x1xf32>
    %211 = vector.broadcast %203 : vector<16x1xf32> to vector<16x128xf32>
    %212 = arith.subf %199, %211 : vector<16x128xf32>
    %cst_81 = arith.constant 9.99999974E-6 : f32
    %213 = vector.broadcast %cst_81 : f32 to vector<16x1xf32>
    %214 = arith.addf %210, %213 : vector<16x1xf32>
    %215 = math.rsqrt %214 : vector<16x1xf32>
    %216 = vector.broadcast %215 : vector<16x1xf32> to vector<16x128xf32>
    %217 = arith.mulf %212, %216 : vector<16x128xf32>
    %218 = vector.broadcast %141 : vector<1x128xf32> to vector<16x128xf32>
    %219 = arith.mulf %217, %218 : vector<16x128xf32>
    %220 = vector.broadcast %142 : vector<1x128xf32> to vector<16x128xf32>
    %221 = arith.addf %219, %220 : vector<16x128xf32>
    %c0_82 = arith.constant 0 : index
    %c0_83 = arith.constant 0 : index
    %222 = vector.load %arg8[%c0_82, %c0_83] : memref<128x128xbf16, #tpu.memory_space<vmem>>, vector<128x128xbf16>
    %223 = arith.truncf %221 : vector<16x128xf32> to vector<16x128xbf16>
    %cst_84 = arith.constant dense<0.000000e+00> : vector<16x128xf32>
    %224 = tpu.matmul %223, %222, %cst_84 {dimension_numbers = #tpu.dot_dimension_numbers<[1], [0], [0], [1], [0, 0, 1, 1], [], []>} : vector<16x128xbf16>, vector<128x128xbf16>, vector<16x128xf32> -> vector<16x128xf32>
    %c0_85 = arith.constant 0 : index
    %c0_86 = arith.constant 0 : index
    %225 = vector.load %arg12[%c0_85, %c0_86] : memref<1x128xf32, #tpu.memory_space<vmem>>, vector<1x128xf32>
    %226 = vector.broadcast %225 : vector<1x128xf32> to vector<16x128xf32>
    %227 = arith.addf %224, %226 : vector<16x128xf32>
    %c0_87 = arith.constant 0 : index
    %c0_88 = arith.constant 0 : index
    %228 = vector.load %arg13[%c0_87, %c0_88] : memref<16x128xf32, #tpu.memory_space<vmem>>, vector<16x128xf32>
    tpu.vector_store %arg13[%c0_87, %c0_88], %227 {strides = array<i32>} : memref<16x128xf32, #tpu.memory_space<vmem>>, vector<16x128xf32>,
    return
  }
  func.func @transform_0(%arg0: i32) -> (i32, i32) {
    %c0_i32 = arith.constant 0 : i32
    %c0_i32_0 = arith.constant 0 : i32
    return %arg0, %c0_i32 : i32, i32
  }
  func.func @transform_1(%arg0: i32) -> (i32, i32) {
    %c0_i32 = arith.constant 0 : i32
    %c0_i32_0 = arith.constant 0 : i32
    %c0_i32_1 = arith.constant 0 : i32
    return %c0_i32, %c0_i32_0 : i32, i32
  }
  func.func @transform_2(%arg0: i32) -> (i32, i32) {
    %c0_i32 = arith.constant 0 : i32
    %c0_i32_0 = arith.constant 0 : i32
    %c0_i32_1 = arith.constant 0 : i32
    return %c0_i32, %c0_i32_0 : i32, i32
  }
  func.func @transform_3(%arg0: i32) -> (i32, i32) {
    %c0_i32 = arith.constant 0 : i32
    %c0_i32_0 = arith.constant 0 : i32
    %c0_i32_1 = arith.constant 0 : i32
    return %c0_i32, %c0_i32_0 : i32, i32
  }
  func.func @transform_4(%arg0: i32) -> (i32, i32, i32) {
    %c0_i32 = arith.constant 0 : i32
    %c0_i32_0 = arith.constant 0 : i32
    %c0_i32_1 = arith.constant 0 : i32
    %c0_i32_2 = arith.constant 0 : i32
    return %c0_i32, %c0_i32_0, %c0_i32_1 : i32, i32, i32
  }
  func.func @transform_5(%arg0: i32) -> (i32, i32, i32) {
    %c0_i32 = arith.constant 0 : i32
    %c0_i32_0 = arith.constant 0 : i32
    %c0_i32_1 = arith.constant 0 : i32
    %c0_i32_2 = arith.constant 0 : i32
    return %c0_i32, %c0_i32_0, %c0_i32_1 : i32, i32, i32
  }
  func.func @transform_6(%arg0: i32) -> (i32, i32, i32) {
    %c0_i32 = arith.constant 0 : i32
    %c0_i32_0 = arith.constant 0 : i32
    %c0_i32_1 = arith.constant 0 : i32
    %c0_i32_2 = arith.constant 0 : i32
    return %c0_i32, %c0_i32_0, %c0_i32_1 : i32, i32, i32
  }
  func.func @transform_7(%arg0: i32) -> (i32, i32) {
    %c0_i32 = arith.constant 0 : i32
    %c0_i32_0 = arith.constant 0 : i32
    %c0_i32_1 = arith.constant 0 : i32
    return %c0_i32, %c0_i32_0 : i32, i32
  }
  func.func @transform_8(%arg0: i32) -> (i32, i32, i32) {
    %c0_i32 = arith.constant 0 : i32
    %c0_i32_0 = arith.constant 0 : i32
    %c0_i32_1 = arith.constant 0 : i32
    %c0_i32_2 = arith.constant 0 : i32
    return %c0_i32, %c0_i32_0, %c0_i32_1 : i32, i32, i32
  }
  func.func @transform_9(%arg0: i32) -> (i32, i32, i32) {
    %c0_i32 = arith.constant 0 : i32
    %c0_i32_0 = arith.constant 0 : i32
    %c0_i32_1 = arith.constant 0 : i32
    %c0_i32_2 = arith.constant 0 : i32
    return %c0_i32, %c0_i32_0, %c0_i32_1 : i32, i32, i32
  }
  func.func @transform_10(%arg0: i32) -> (i32, i32) {
    %c0_i32 = arith.constant 0 : i32
    %c0_i32_0 = arith.constant 0 : i32
    %c0_i32_1 = arith.constant 0 : i32
    return %c0_i32, %c0_i32_0 : i32, i32
  }
  func.func @transform_11(%arg0: i32) -> (i32, i32) {
    %c0_i32 = arith.constant 0 : i32
    %c0_i32_0 = arith.constant 0 : i32
    %c0_i32_1 = arith.constant 0 : i32
    return %c0_i32, %c0_i32_0 : i32, i32
  }
  func.func @transform_12(%arg0: i32) -> (i32, i32) {
    %c0_i32 = arith.constant 0 : i32
    %c0_i32_0 = arith.constant 0 : i32
    return %arg0, %c0_i32 : i32, i32
  }
}

</mosaic_0001>

<llo_original>
// kernel: forward.1
$region0: #{forward.1}
  #allocation0 [shape = 'u32[]', space=smem, size = 0x4, offset = 0x4, fixed_abs, tag = 'smem constant byte address 0x4 - core index']
  #allocation1 [shape = 'u32[144,128]{1,0:T(1,128)}', space=vmem, size = 0x12000, scoped, tag = 'internal scratch']
  %s0 = inlined_call_operand.vmem [shape: bf16[16,128], index: 0, kind: input, shape index: {}]
  %s1 = inlined_call_operand.vmem [shape: bf16[128,256], index: 1, kind: input, shape index: {}]
  %s2 = inlined_call_operand.vmem [shape: bf16[128,128], index: 2, kind: input, shape index: {}]
  %s3 = inlined_call_operand.vmem [shape: bf16[128,128], index: 3, kind: input, shape index: {}]
  %s4 = inlined_call_operand.vmem [shape: bf16[2,128,128], index: 4, kind: input, shape index: {}]
  %s5 = inlined_call_operand.vmem [shape: bf16[2,128,512], index: 5, kind: input, shape index: {}]
  %s6 = inlined_call_operand.vmem [shape: bf16[2,512,128], index: 6, kind: input, shape index: {}]
  %s7 = inlined_call_operand.vmem [shape: bf16[128,128], index: 7, kind: input, shape index: {}]
  %s8 = inlined_call_operand.vmem [shape: f32[2,8,128], index: 8, kind: input, shape index: {}]
  %s9 = inlined_call_operand.vmem [shape: f32[2,1,512], index: 9, kind: input, shape index: {}]
  %s10 = inlined_call_operand.vmem [shape: f32[3,128], index: 10, kind: input, shape index: {}]
  %s11 = inlined_call_operand.vmem [shape: f32[1,128], index: 11, kind: input, shape index: {}]
  %s12 = inlined_call_operand.vmem [shape: f32[16,128], index: 12, kind: output, shape index: {}]
  %s13 = sld [smem:[#allocation0]]
  $region58: #{forward.1} parent=0
    _
  %s15 = ssub.s32 1, %s13
  %s16 = scalar_select 0, %s15, %s13
  // Predicated region
  $region2: #{forward.1} parent=0 // pred_check
    _
  $region3: #{forward.1} parent=0 // pred_check_branch
    %18 = sbr.rel (0) target = $region5
  $region4: #{forward.1} parent=0 // pred_region
    _
  $region5: #{forward.1} parent=0 // pred_fallthru
    _
  // Predicated region
  $region6: #{forward.1} parent=0 // pred_check
    _
  $region7: #{forward.1} parent=0 // pred_check_branch
    %20 = sbr.rel (0) target = $region9
  $region8: #{forward.1} parent=0 // pred_region
    _
  $region9: #{forward.1} parent=0 // pred_fallthru
    _
  // Predicated region
  $region10: #{forward.1} parent=0 // pred_check
    _
  $region11: #{forward.1} parent=0 // pred_check_branch
    %22 = sbr.rel (0) target = $region13
  $region12: #{forward.1} parent=0 // pred_region
    _
  $region13: #{forward.1} parent=0 // pred_fallthru
    _
  // Predicated region
  $region14: #{forward.1} parent=0 // pred_check
    _
  $region15: #{forward.1} parent=0 // pred_check_branch
    %24 = sbr.rel (0) target = $region17
  $region16: #{forward.1} parent=0 // pred_region
    _
  $region17: #{forward.1} parent=0 // pred_fallthru
    _
  // Predicated region
  $region18: #{forward.1} parent=0 // pred_check
    _
  $region19: #{forward.1} parent=0 // pred_check_branch
    %26 = sbr.rel (0) target = $region21
  $region20: #{forward.1} parent=0 // pred_region
    _
  $region21: #{forward.1} parent=0 // pred_fallthru
    _
  // Predicated region
  $region22: #{forward.1} parent=0 // pred_check
    _
  $region23: #{forward.1} parent=0 // pred_check_branch
    %28 = sbr.rel (0) target = $region25
  $region24: #{forward.1} parent=0 // pred_region
    _
  $region25: #{forward.1} parent=0 // pred_fallthru
    _
  // Predicated region
  $region26: #{forward.1} parent=0 // pred_check
    _
  $region27: #{forward.1} parent=0 // pred_check_branch
    %30 = sbr.rel (0) target = $region29
  $region28: #{forward.1} parent=0 // pred_region
    _
  $region29: #{forward.1} parent=0 // pred_fallthru
    _
  // Predicated region
  $region30: #{forward.1} parent=0 // pred_check
    _
  $region31: #{forward.1} parent=0 // pred_check_branch
    %32 = sbr.rel (0) target = $region33
  $region32: #{forward.1} parent=0 // pred_region
    _
  $region33: #{forward.1} parent=0 // pred_fallthru
    _
  // Predicated region
  $region34: #{forward.1} parent=0 // pred_check
    _
  $region35: #{forward.1} parent=0 // pred_check_branch
    %34 = sbr.rel (0) target = $region37
  $region36: #{forward.1} parent=0 // pred_region
    _
  $region37: #{forward.1} parent=0 // pred_fallthru
    _
  // Predicated region
  $region38: #{forward.1} parent=0 // pred_check
    _
  $region39: #{forward.1} parent=0 // pred_check_branch
    %36 = sbr.rel (0) target = $region41
  $region40: #{forward.1} parent=0 // pred_region
    _
  $region41: #{forward.1} parent=0 // pred_fallthru
    _
  // Predicated region
  $region42: #{forward.1} parent=0 // pred_check
    _
  $region43: #{forward.1} parent=0 // pred_check_branch
    %38 = sbr.rel (0) target = $region45
  $region44: #{forward.1} parent=0 // pred_region
    _
  $region45: #{forward.1} parent=0 // pred_fallthru
    _
  // Predicated region
  $region46: #{forward.1} parent=0 // pred_check
    _
  $region47: #{forward.1} parent=0 // pred_check_branch
    %40 = sbr.rel (0) target = $region49
  $region48: #{forward.1} parent=0 // pred_region
    _
  $region49: #{forward.1} parent=0 // pred_fallthru
    _
  %v46 = vld [vmem:[%s0] sm:$0xf]
  %v47 = vld [vmem:[%s0 + $0x4] sm:$0xf]
  %v48 = vld [vmem:[%s10] sm:$0x7]
  %v49 = vld [vmem:[%s1] sm:$0xff]
  %v50 = vld [vmem:[%s1 + $0x8] sm:$0xff]
  %v51 = vld [vmem:[%s1 + $0x10] sm:$0xff]
  %v52 = vld [vmem:[%s1 + $0x18] sm:$0xff]
  %v53 = vld [vmem:[%s1 + $0x20] sm:$0xff]
  %v54 = vld [vmem:[%s1 + $0x28] sm:$0xff]
  %v55 = vld [vmem:[%s1 + $0x30] sm:$0xff]
  %v56 = vld [vmem:[%s1 + $0x38] sm:$0xff]
  %v57 = vld [vmem:[%s1 + $0x40] sm:$0xff]
  %v58 = vld [vmem:[%s1 + $0x48] sm:$0xff]
  %v59 = vld [vmem:[%s1 + $0x50] sm:$0xff]
  %v60 = vld [vmem:[%s1 + $0x58] sm:$0xff]
  %v61 = vld [vmem:[%s1 + $0x60] sm:$0xff]
  %v62 = vld [vmem:[%s1 + $0x68] sm:$0xff]
  %v63 = vld [vmem:[%s1 + $0x70] sm:$0xff]
  %v64 = vld [vmem:[%s1 + $0x78] sm:$0xff]
  %v67 = vunpack.c.l.b16 %v46
  %v68 = vunpack.c.l.b16 %v47
  %v69 = vpack.c.b16 %v68, %v67
  %v87 = vunpack.c.l.b16 %v49
  %v88 = vunpack.c.h.b16 %v49
  %v89 = vunpack.c.l.b16 %v50
  %v90 = vunpack.c.h.b16 %v50
  %v91 = vunpack.c.l.b16 %v51
  %v92 = vunpack.c.h.b16 %v51
  %v93 = vunpack.c.l.b16 %v52
  %v94 = vunpack.c.h.b16 %v52
  %v95 = vunpack.c.l.b16 %v53
  %v96 = vunpack.c.h.b16 %v53
  %v97 = vunpack.c.l.b16 %v54
  %v98 = vunpack.c.h.b16 %v54
  %v99 = vunpack.c.l.b16 %v55
  %v100 = vunpack.c.h.b16 %v55
  %v101 = vunpack.c.l.b16 %v56
  %v102 = vunpack.c.h.b16 %v56
  %v103 = vunpack.c.l.b16 %v57
  %v104 = vunpack.c.h.b16 %v57
  %v105 = vunpack.c.l.b16 %v58
  %v106 = vunpack.c.h.b16 %v58
  %v107 = vunpack.c.l.b16 %v59
  %v108 = vunpack.c.h.b16 %v59
  %v109 = vunpack.c.l.b16 %v60
  %v110 = vunpack.c.h.b16 %v60
  %v111 = vunpack.c.l.b16 %v61
  %v112 = vunpack.c.h.b16 %v61
  %v113 = vunpack.c.l.b16 %v62
  %v114 = vunpack.c.h.b16 %v62
  %v115 = vunpack.c.l.b16 %v63
  %v116 = vunpack.c.h.b16 %v63
  %v117 = vunpack.c.l.b16 %v64
  %v118 = vunpack.c.h.b16 %v64
  %v119 = vpack.c.b16 %v89, %v87
  %v120 = vpack.c.b16 %v90, %v88
  %v121 = vpack.c.b16 %v93, %v91
  %v122 = vpack.c.b16 %v94, %v92
  %v123 = vpack.c.b16 %v97, %v95
  %v124 = vpack.c.b16 %v98, %v96
  %v125 = vpack.c.b16 %v101, %v99
  %v126 = vpack.c.b16 %v102, %v100
  %v127 = vpack.c.b16 %v105, %v103
  %v128 = vpack.c.b16 %v106, %v104
  %v129 = vpack.c.b16 %v109, %v107
  %v130 = vpack.c.b16 %v110, %v108
  %v131 = vpack.c.b16 %v113, %v111
  %v132 = vpack.c.b16 %v114, %v112
  %v133 = vpack.c.b16 %v117, %v115
  %v134 = vpack.c.b16 %v118, %v116
  %151 = vmatprep.subr.bf16.mxu0 %v120
  %152 = vmatpush1.bf16.msra.mxu0 %v119
  %153 = vmatprep.subr.bf16.mxu0 %v122
  %154 = vmatpush1.bf16.msra.mxu0 %v121
  %155 = vmatprep.subr.bf16.mxu0 %v124
  %156 = vmatpush1.bf16.msra.mxu0 %v123
  %157 = vmatprep.subr.bf16.mxu0 %v126
  %158 = vmatpush1.bf16.msra.mxu0 %v125
  %159 = vmatprep.subr.bf16.mxu0 %v128
  %160 = vmatpush1.bf16.msra.mxu0 %v127
  %161 = vmatprep.subr.bf16.mxu0 %v130
  %162 = vmatpush1.bf16.msra.mxu0 %v129
  %163 = vmatprep.subr.bf16.mxu0 %v132
  %164 = vmatpush1.bf16.msra.mxu0 %v131
  %165 = vmatprep.subr.bf16.mxu0 %v134
  %166 = vmatpush1.bf16.msra.mxu0 %v133
  %167 = vmatprep.subr.bf16.mxu0 0
  %168 = vmatpush1.bf16.msra.mxu0 0
  %169 = vmatprep.subr.bf16.mxu0 0
  %170 = vmatpush1.bf16.msra.mxu0 0
  %171 = vmatprep.subr.bf16.mxu0 0
  %172 = vmatpush1.bf16.msra.mxu0 0
  %173 = vmatprep.subr.bf16.mxu0 0
  %174 = vmatpush1.bf16.msra.mxu0 0
  %175 = vmatprep.subr.bf16.mxu0 0
  %176 = vmatpush1.bf16.msra.mxu0 0
  %177 = vmatprep.subr.bf16.mxu0 0
  %178 = vmatpush1.bf16.msra.mxu0 0
  %179 = vmatprep.subr.bf16.mxu0 0
  %180 = vmatpush1.bf16.msra.mxu0 0
  %181 = vmatprep.subr.bf16.mxu0 0
  %182 = vmatpush1.bf16.msra.mxu0 0
  %183 = vmatprep.mubr.bf16.mxu0 0
  %184 = vmatmul.mubr.bf16.gmra.mrb[0].mxu0 %v69
  %v185 = vpop.f32.mrb[0].mxu0
  %v186 = vadd.f32 0.0, %v185
  %v187 = vpop.f32.mrb[0].mxu0
  %v188 = vadd.f32 0.0, %v187
  %v189 = vpop.f32.mrb[0].mxu0
  %v190 = vadd.f32 0.0, %v189
  %v191 = vpop.f32.mrb[0].mxu0
  %v192 = vadd.f32 0.0, %v191
  %193 = vdwg.mxu0
  %v194 = vlaneseq
  %v195 = vshrl.u32 %v194, 7
  %v196 = vsub.s32 0, %v195
  %v197 = vrot.slane %v48, %v196
  %v198 = vadd.f32 %v186, %v197
  %v199 = vadd.f32 %v190, %v197
  %v200 = vmul.f32 %v198, 0.5
  %v201 = vmul.f32 %v199, 0.5
  %v202 = vmul.f32 %v198, 0.044715
  %v203 = vmul.f32 %v199, 0.044715
  %v204 = vmul.f32 %v202, %v198
  %v205 = vmul.f32 %v203, %v199
  %v206 = vmul.f32 %v204, %v198
  %v207 = vmul.f32 %v205, %v199
  %v208 = vadd.f32 %v198, %v206
  %v209 = vadd.f32 %v199, %v207
  %v210 = vmul.f32 %v208, 0.7978846
  %v211 = vmul.f32 %v209, 0.7978846
  %v212 = vtanh.pop %v210
  %v213 = vtanh.pop %v211
  %v214 = vadd.f32 %v212, 1.0
  %v215 = vadd.f32 %v213, 1.0
  %v216 = vmul.f32 %v200, %v214
  %v217 = vmul.f32 %v201, %v215
  %v218 = vld [vmem:[%s2] sm:$0xf]
  %v219 = vld [vmem:[%s2 + $0x4] sm:$0xf]
  %v220 = vld [vmem:[%s2 + $0x8] sm:$0xf]
  %v221 = vld [vmem:[%s2 + $0xc] sm:$0xf]
  %v222 = vld [vmem:[%s2 + $0x10] sm:$0xf]
  %v223 = vld [vmem:[%s2 + $0x14] sm:$0xf]
  %v224 = vld [vmem:[%s2 + $0x18] sm:$0xf]
  %v225 = vld [vmem:[%s2 + $0x1c] sm:$0xf]
  %v226 = vld [vmem:[%s2 + $0x20] sm:$0xf]
  %v227 = vld [vmem:[%s2 + $0x24] sm:$0xf]
  %v228 = vld [vmem:[%s2 + $0x28] sm:$0xf]
  %v229 = vld [vmem:[%s2 + $0x2c] sm:$0xf]
  %v230 = vld [vmem:[%s2 + $0x30] sm:$0xf]
  %v231 = vld [vmem:[%s2 + $0x34] sm:$0xf]
  %v232 = vld [vmem:[%s2 + $0x38] sm:$0xf]
  %v233 = vld [vmem:[%s2 + $0x3c] sm:$0xf]
  %v234 = vpack.c.bf16 %v217, %v216
  %v235 = vlaneseq
  %v236 = vshrl.u32 %v235, 7
  %v237 = vsub.s32 1, %v236
  %v238 = vrot.slane %v48, %v237
  %v255 = vunpack.c.l.b16 %v218
  %v256 = vunpack.c.l.b16 %v219
  %v257 = vunpack.c.l.b16 %v220
  %v258 = vunpack.c.l.b16 %v221
  %v259 = vunpack.c.l.b16 %v222
  %v260 = vunpack.c.l.b16 %v223
  %v261 = vunpack.c.l.b16 %v224
  %v262 = vunpack.c.l.b16 %v225
  %v263 = vunpack.c.l.b16 %v226
  %v264 = vunpack.c.l.b16 %v227
  %v265 = vunpack.c.l.b16 %v228
  %v266 = vunpack.c.l.b16 %v229
  %v267 = vunpack.c.l.b16 %v230
  %v268 = vunpack.c.l.b16 %v231
  %v269 = vunpack.c.l.b16 %v232
  %v270 = vunpack.c.l.b16 %v233
  %v271 = vpack.c.b16 %v256, %v255
  %v272 = vpack.c.b16 %v258, %v257
  %v273 = vpack.c.b16 %v260, %v259
  %v274 = vpack.c.b16 %v262, %v261
  %v275 = vpack.c.b16 %v264, %v263
  %v276 = vpack.c.b16 %v266, %v265
  %v277 = vpack.c.b16 %v268, %v267
  %v278 = vpack.c.b16 %v270, %v269
  %287 = vmatprep.subr.bf16.mxu0 0
  %288 = vmatpush1.bf16.msra.mxu0 %v271
  %289 = vmatprep.subr.bf16.mxu0 0
  %290 = vmatpush1.bf16.msra.mxu0 %v272
  %291 = vmatprep.subr.bf16.mxu0 0
  %292 = vmatpush1.bf16.msra.mxu0 %v273
  %293 = vmatprep.subr.bf16.mxu0 0
  %294 = vmatpush1.bf16.msra.mxu0 %v274
  %295 = vmatprep.subr.bf16.mxu0 0
  %296 = vmatpush1.bf16.msra.mxu0 %v275
  %297 = vmatprep.subr.bf16.mxu0 0
  %298 = vmatpush1.bf16.msra.mxu0 %v276
  %299 = vmatprep.subr.bf16.mxu0 0
  %300 = vmatpush1.bf16.msra.mxu0 %v277
  %301 = vmatprep.subr.bf16.mxu0 0
  %302 = vmatpush1.bf16.msra.mxu0 %v278
  %303 = vmatprep.subr.bf16.mxu0 0
  %304 = vmatpush1.bf16.msra.mxu0 0
  %305 = vmatprep.subr.bf16.mxu0 0
  %306 = vmatpush1.bf16.msra.mxu0 0
  %307 = vmatprep.subr.bf16.mxu0 0
  %308 = vmatpush1.bf16.msra.mxu0 0
  %309 = vmatprep.subr.bf16.mxu0 0
  %310 = vmatpush1.bf16.msra.mxu0 0
  %311 = vmatprep.subr.bf16.mxu0 0
  %312 = vmatpush1.bf16.msra.mxu0 0
  %313 = vmatprep.subr.bf16.mxu0 0
  %314 = vmatpush1.bf16.msra.mxu0 0
  %315 = vmatprep.subr.bf16.mxu0 0
  %316 = vmatpush1.bf16.msra.mxu0 0
  %317 = vmatprep.subr.bf16.mxu0 0
  %318 = vmatpush1.bf16.msra.mxu0 0
  %319 = vmatprep.mubr.bf16.mxu0 0
  %320 = vmatmul.mubr.bf16.gmra.mrb[0].mxu0 %v234
  %v321 = vpop.f32.mrb[0].mxu0
  %v322 = vadd.f32 %v238, %v321
  %v323 = vpop.f32.mrb[0].mxu0
  %v324 = vpop.f32.mrb[0].mxu0
  %v325 = vadd.f32 %v238, %v324
  %v326 = vpop.f32.mrb[0].mxu0
  %327 = vdwg.mxu0
  %v328 = vmul.f32 %v322, 0.5
  %v329 = vmul.f32 %v325, 0.5
  %v330 = vmul.f32 %v322, 0.044715
  %v331 = vmul.f32 %v325, 0.044715
  %v332 = vmul.f32 %v330, %v322
  %v333 = vmul.f32 %v331, %v325
  %v334 = vmul.f32 %v332, %v322
  %v335 = vmul.f32 %v333, %v325
  %v336 = vadd.f32 %v322, %v334
  %v337 = vadd.f32 %v325, %v335
  %v338 = vmul.f32 %v336, 0.7978846
  %v339 = vmul.f32 %v337, 0.7978846
  %v340 = vtanh.pop %v338
  %v341 = vtanh.pop %v339
  %v342 = vadd.f32 %v340, 1.0
  %v343 = vadd.f32 %v341, 1.0
  %v344 = vmul.f32 %v328, %v342
  %v345 = vmul.f32 %v329, %v343
  %v346 = vld [vmem:[%s3] sm:$0xf]
  %v347 = vld [vmem:[%s3 + $0x4] sm:$0xf]
  %v348 = vld [vmem:[%s3 + $0x8] sm:$0xf]
  %v349 = vld [vmem:[%s3 + $0xc] sm:$0xf]
  %v350 = vld [vmem:[%s3 + $0x10] sm:$0xf]
  %v351 = vld [vmem:[%s3 + $0x14] sm:$0xf]
  %v352 = vld [vmem:[%s3 + $0x18] sm:$0xf]
  %v353 = vld [vmem:[%s3 + $0x1c] sm:$0xf]
  %v354 = vld [vmem:[%s3 + $0x20] sm:$0xf]
  %v355 = vld [vmem:[%s3 + $0x24] sm:$0xf]
  %v356 = vld [vmem:[%s3 + $0x28] sm:$0xf]
  %v357 = vld [vmem:[%s3 + $0x2c] sm:$0xf]
  %v358 = vld [vmem:[%s3 + $0x30] sm:$0xf]
  %v359 = vld [vmem:[%s3 + $0x34] sm:$0xf]
  %v360 = vld [vmem:[%s3 + $0x38] sm:$0xf]
  %v361 = vld [vmem:[%s3 + $0x3c] sm:$0xf]
  %v362 = vpack.c.bf16 %v345, %v344
  %v379 = vunpack.c.l.b16 %v346
  %v380 = vunpack.c.l.b16 %v347
  %v381 = vunpack.c.l.b16 %v348
  %v382 = vunpack.c.l.b16 %v349
  %v383 = vunpack.c.l.b16 %v350
  %v384 = vunpack.c.l.b16 %v351
  %v385 = vunpack.c.l.b16 %v352
  %v386 = vunpack.c.l.b16 %v353
  %v387 = vunpack.c.l.b16 %v354
  %v388 = vunpack.c.l.b16 %v355
  %v389 = vunpack.c.l.b16 %v356
  %v390 = vunpack.c.l.b16 %v357
  %v391 = vunpack.c.l.b16 %v358
  %v392 = vunpack.c.l.b16 %v359
  %v393 = vunpack.c.l.b16 %v360
  %v394 = vunpack.c.l.b16 %v361
  %v395 = vpack.c.b16 %v380, %v379
  %v396 = vpack.c.b16 %v382, %v381
  %v397 = vpack.c.b16 %v384, %v383
  %v398 = vpack.c.b16 %v386, %v385
  %v399 = vpack.c.b16 %v388, %v387
  %v400 = vpack.c.b16 %v390, %v389
  %v401 = vpack.c.b16 %v392, %v391
  %v402 = vpack.c.b16 %v394, %v393
  %411 = vmatprep.subr.bf16.mxu0 0
  %412 = vmatpush1.bf16.msra.mxu0 %v395
  %413 = vmatprep.subr.bf16.mxu0 0
  %414 = vmatpush1.bf16.msra.mxu0 %v396
  %415 = vmatprep.subr.bf16.mxu0 0
  %416 = vmatpush1.bf16.msra.mxu0 %v397
  %417 = vmatprep.subr.bf16.mxu0 0
  %418 = vmatpush1.bf16.msra.mxu0 %v398
  %419 = vmatprep.subr.bf16.mxu0 0
  %420 = vmatpush1.bf16.msra.mxu0 %v399
  %421 = vmatprep.subr.bf16.mxu0 0
  %422 = vmatpush1.bf16.msra.mxu0 %v400
  %423 = vmatprep.subr.bf16.mxu0 0
  %424 = vmatpush1.bf16.msra.mxu0 %v401
  %425 = vmatprep.subr.bf16.mxu0 0
  %426 = vmatpush1.bf16.msra.mxu0 %v402
  %427 = vmatprep.subr.bf16.mxu0 0
  %428 = vmatpush1.bf16.msra.mxu0 0
  %429 = vmatprep.subr.bf16.mxu0 0
  %430 = vmatpush1.bf16.msra.mxu0 0
  %431 = vmatprep.subr.bf16.mxu0 0
  %432 = vmatpush1.bf16.msra.mxu0 0
  %433 = vmatprep.subr.bf16.mxu0 0
  %434 = vmatpush1.bf16.msra.mxu0 0
  %435 = vmatprep.subr.bf16.mxu0 0
  %436 = vmatpush1.bf16.msra.mxu0 0
  %437 = vmatprep.subr.bf16.mxu0 0
  %438 = vmatpush1.bf16.msra.mxu0 0
  %439 = vmatprep.subr.bf16.mxu0 0
  %440 = vmatpush1.bf16.msra.mxu0 0
  %441 = vmatprep.subr.bf16.mxu0 0
  %442 = vmatpush1.bf16.msra.mxu0 0
  %443 = vmatprep.mubr.bf16.mxu0 0
  %444 = vmatmul.mubr.bf16.gmra.mrb[0].mxu0 %v362
  %v445 = vpop.f32.mrb[0].mxu0
  %v446 = vadd.f32 %v188, %v445
  %v447 = vpop.f32.mrb[0].mxu0
  %v448 = vpop.f32.mrb[0].mxu0
  %v449 = vadd.f32 %v192, %v448
  %v450 = vpop.f32.mrb[0].mxu0
  %451 = vdwg.mxu0
  %v452 = vlaneseq
  %v453 = vshrl.u32 %v452, 7
  %v454 = vsub.s32 2, %v453
  %v455 = vrot.slane %v48, %v454
  %v456 = vadd.f32 %v446, %v455
  %v457 = vadd.f32 %v449, %v455
  %v458 = vld [vmem:[%s8] sm:$0xff]
  %v459 = vld [vmem:[%s4] sm:$0xf]
  %v460 = vld [vmem:[%s4 + $0x4] sm:$0xf]
  %v461 = vld [vmem:[%s4 + $0x8] sm:$0xf]
  %v462 = vld [vmem:[%s4 + $0xc] sm:$0xf]
  %v463 = vld [vmem:[%s4 + $0x10] sm:$0xf]
  %v464 = vld [vmem:[%s4 + $0x14] sm:$0xf]
  %v465 = vld [vmem:[%s4 + $0x18] sm:$0xf]
  %v466 = vld [vmem:[%s4 + $0x1c] sm:$0xf]
  %v467 = vld [vmem:[%s4 + $0x20] sm:$0xf]
  %v468 = vld [vmem:[%s4 + $0x24] sm:$0xf]
  %v469 = vld [vmem:[%s4 + $0x28] sm:$0xf]
  %v470 = vld [vmem:[%s4 + $0x2c] sm:$0xf]
  %v471 = vld [vmem:[%s4 + $0x30] sm:$0xf]
  %v472 = vld [vmem:[%s4 + $0x34] sm:$0xf]
  %v473 = vld [vmem:[%s4 + $0x38] sm:$0xf]
  %v474 = vld [vmem:[%s4 + $0x3c] sm:$0xf]
  %v475 = vpack.c.bf16 %v457, %v456
  %v476 = vlaneseq
  %v477 = vshrl.u32 %v476, 7
  %v478 = vsub.s32 0, %v477
  %v479 = vrot.slane %v458, %v478
  %v496 = vunpack.c.l.b16 %v459
  %v497 = vunpack.c.l.b16 %v460
  %v498 = vunpack.c.l.b16 %v461
  %v499 = vunpack.c.l.b16 %v462
  %v500 = vunpack.c.l.b16 %v463
  %v501 = vunpack.c.l.b16 %v464
  %v502 = vunpack.c.l.b16 %v465
  %v503 = vunpack.c.l.b16 %v466
  %v504 = vunpack.c.l.b16 %v467
  %v505 = vunpack.c.l.b16 %v468
  %v506 = vunpack.c.l.b16 %v469
  %v507 = vunpack.c.l.b16 %v470
  %v508 = vunpack.c.l.b16 %v471
  %v509 = vunpack.c.l.b16 %v472
  %v510 = vunpack.c.l.b16 %v473
  %v511 = vunpack.c.l.b16 %v474
  %v512 = vpack.c.b16 %v497, %v496
  %v513 = vpack.c.b16 %v499, %v498
  %v514 = vpack.c.b16 %v501, %v500
  %v515 = vpack.c.b16 %v503, %v502
  %v516 = vpack.c.b16 %v505, %v504
  %v517 = vpack.c.b16 %v507, %v506
  %v518 = vpack.c.b16 %v509, %v508
  %v519 = vpack.c.b16 %v511, %v510
  %528 = vmatprep.subr.bf16.mxu0 0
  %529 = vmatpush1.bf16.msra.mxu0 %v512
  %530 = vmatprep.subr.bf16.mxu0 0
  %531 = vmatpush1.bf16.msra.mxu0 %v513
  %532 = vmatprep.subr.bf16.mxu0 0
  %533 = vmatpush1.bf16.msra.mxu0 %v514
  %534 = vmatprep.subr.bf16.mxu0 0
  %535 = vmatpush1.bf16.msra.mxu0 %v515
  %536 = vmatprep.subr.bf16.mxu0 0
  %537 = vmatpush1.bf16.msra.mxu0 %v516
  %538 = vmatprep.subr.bf16.mxu0 0
  %539 = vmatpush1.bf16.msra.mxu0 %v517
  %540 = vmatprep.subr.bf16.mxu0 0
  %541 = vmatpush1.bf16.msra.mxu0 %v518
  %542 = vmatprep.subr.bf16.mxu0 0
  %543 = vmatpush1.bf16.msra.mxu0 %v519
  %544 = vmatprep.subr.bf16.mxu0 0
  %545 = vmatpush1.bf16.msra.mxu0 0
  %546 = vmatprep.subr.bf16.mxu0 0
  %547 = vmatpush1.bf16.msra.mxu0 0
  %548 = vmatprep.subr.bf16.mxu0 0
  %549 = vmatpush1.bf16.msra.mxu0 0
  %550 = vmatprep.subr.bf16.mxu0 0
  %551 = vmatpush1.bf16.msra.mxu0 0
  %552 = vmatprep.subr.bf16.mxu0 0
  %553 = vmatpush1.bf16.msra.mxu0 0
  %554 = vmatprep.subr.bf16.mxu0 0
  %555 = vmatpush1.bf16.msra.mxu0 0
  %556 = vmatprep.subr.bf16.mxu0 0
  %557 = vmatpush1.bf16.msra.mxu0 0
  %558 = vmatprep.subr.bf16.mxu0 0
  %559 = vmatpush1.bf16.msra.mxu0 0
  %560 = vmatprep.mubr.bf16.mxu0 0
  %561 = vmatmul.mubr.bf16.gmra.mrb[0].mxu0 %v475
  %v562 = vpop.f32.mrb[0].mxu0
  %v563 = vadd.f32 %v479, %v562
  %v564 = vpop.f32.mrb[0].mxu0
  %v565 = vpop.f32.mrb[0].mxu0
  %v566 = vadd.f32 %v479, %v565
  %v567 = vpop.f32.mrb[0].mxu0
  %568 = vdwg.mxu0
  %v569 = vadd.f32 %v456, %v563
  %v570 = vadd.f32 %v457, %v566
  %571 = vadd.xlane.f32.xlu0 %v569
  %v572 = vpop.xlane.xlu0 %571
  %573 = vadd.xlane.f32.xlu0 %v570
  %v574 = vpop.xlane.xlu0 %573
  %v575 = vrcp.pop 128.0
  %v576 = vmul.f32 %v572, %v575
  %v577 = vmul.f32 %v574, %v575
  %v578 = vsub.f32 %v569, %v576
  %v579 = vsub.f32 %v570, %v577
  %v580 = vmul.f32 %v578, %v578
  %v581 = vmul.f32 %v579, %v579
  %582 = vadd.xlane.f32.xlu0 %v580
  %v583 = vpop.xlane.xlu0 %582
  %584 = vadd.xlane.f32.xlu0 %v581
  %v585 = vpop.xlane.xlu0 %584
  %v586 = vmul.f32 %v583, %v575
  %v587 = vmul.f32 %v585, %v575
  %v588 = vadd.f32 %v586, 1e-05
  %v589 = vadd.f32 %v587, 1e-05
  %v590 = vrsqrt.pop %v588
  %v591 = vrsqrt.pop %v589
  %v592 = vmul.f32 %v578, %v590
  %v593 = vmul.f32 %v579, %v591
  %v594 = vlaneseq
  %v595 = vshrl.u32 %v594, 7
  %v596 = vsub.s32 1, %v595
  %v597 = vrot.slane %v458, %v596
  %v598 = vmul.f32 %v592, %v597
  %v599 = vmul.f32 %v593, %v597
  %v600 = vlaneseq
  %v601 = vshrl.u32 %v600, 7
  %v602 = vsub.s32 2, %v601
  %v603 = vrot.slane %v458, %v602
  %v604 = vadd.f32 %v598, %v603
  %v605 = vadd.f32 %v599, %v603
  %v606 = vld [vmem:[%s5] sm:$0xff]
  %v607 = vld [vmem:[%s5 + $0x8] sm:$0xff]
  %v608 = vld [vmem:[%s5 + $0x10] sm:$0xff]
  %v609 = vld [vmem:[%s5 + $0x18] sm:$0xff]
  %v610 = vld [vmem:[%s5 + $0x20] sm:$0xff]
  %v611 = vld [vmem:[%s5 + $0x28] sm:$0xff]
  %v612 = vld [vmem:[%s5 + $0x30] sm:$0xff]
  %v613 = vld [vmem:[%s5 + $0x38] sm:$0xff]
  %v614 = vld [vmem:[%s5 + $0x40] sm:$0xff]
  %v615 = vld [vmem:[%s5 + $0x48] sm:$0xff]
  %v616 = vld [vmem:[%s5 + $0x50] sm:$0xff]
  %v617 = vld [vmem:[%s5 + $0x58] sm:$0xff]
  %v618 = vld [vmem:[%s5 + $0x60] sm:$0xff]
  %v619 = vld [vmem:[%s5 + $0x68] sm:$0xff]
  %v620 = vld [vmem:[%s5 + $0x70] sm:$0xff]
  %v621 = vld [vmem:[%s5 + $0x78] sm:$0xff]
  %v622 = vld [vmem:[%s5 + $0x80] sm:$0xff]
  %v623 = vld [vmem:[%s5 + $0x88] sm:$0xff]
  %v624 = vld [vmem:[%s5 + $0x90] sm:$0xff]
  %v625 = vld [vmem:[%s5 + $0x98] sm:$0xff]
  %v626 = vld [vmem:[%s5 + $0xa0] sm:$0xff]
  %v627 = vld [vmem:[%s5 + $0xa8] sm:$0xff]
  %v628 = vld [vmem:[%s5 + $0xb0] sm:$0xff]
  %v629 = vld [vmem:[%s5 + $0xb8] sm:$0xff]
  %v630 = vld [vmem:[%s5 + $0xc0] sm:$0xff]
  %v631 = vld [vmem:[%s5 + $0xc8] sm:$0xff]
  %v632 = vld [vmem:[%s5 + $0xd0] sm:$0xff]
  %v633 = vld [vmem:[%s5 + $0xd8] sm:$0xff]
  %v634 = vld [vmem:[%s5 + $0xe0] sm:$0xff]
  %v635 = vld [vmem:[%s5 + $0xe8] sm:$0xff]
  %v636 = vld [vmem:[%s5 + $0xf0] sm:$0xff]
  %v637 = vld [vmem:[%s5 + $0xf8] sm:$0xff]
  %v638 = vpack.c.bf16 %v605, %v604
  %v639 = vld [vmem:[%s9] sm:$0xf]
  %v641 = vlaneseq
  %v642 = vshrl.u32 %v641, 7
  %v643 = vsub.s32 0, %v642
  %v644 = vrot.slane %v639, %v643
  %v645 = vlaneseq
  %v646 = vshrl.u32 %v645, 7
  %v647 = vsub.s32 1, %v646
  %v648 = vrot.slane %v639, %v647
  %v649 = vlaneseq
  %v650 = vshrl.u32 %v649, 7
  %v651 = vsub.s32 2, %v650
  %v652 = vrot.slane %v639, %v651
  %v653 = vlaneseq
  %v654 = vshrl.u32 %v653, 7
  %v655 = vsub.s32 3, %v654
  %v656 = vrot.slane %v639, %v655
  %v693 = vunpack.c.l.b16 %v606
  %v694 = vunpack.c.h.b16 %v606
  %v695 = vunpack.c.l.b16 %v607
  %v696 = vunpack.c.h.b16 %v607
  %v697 = vunpack.c.l.b16 %v608
  %v698 = vunpack.c.h.b16 %v608
  %v699 = vunpack.c.l.b16 %v609
  %v700 = vunpack.c.h.b16 %v609
  %v701 = vunpack.c.l.b16 %v610
  %v702 = vunpack.c.h.b16 %v610
  %v703 = vunpack.c.l.b16 %v611
  %v704 = vunpack.c.h.b16 %v611
  %v705 = vunpack.c.l.b16 %v612
  %v706 = vunpack.c.h.b16 %v612
  %v707 = vunpack.c.l.b16 %v613
  %v708 = vunpack.c.h.b16 %v613
  %v709 = vunpack.c.l.b16 %v614
  %v710 = vunpack.c.h.b16 %v614
  %v711 = vunpack.c.l.b16 %v615
  %v712 = vunpack.c.h.b16 %v615
  %v713 = vunpack.c.l.b16 %v616
  %v714 = vunpack.c.h.b16 %v616
  %v715 = vunpack.c.l.b16 %v617
  %v716 = vunpack.c.h.b16 %v617
  %v717 = vunpack.c.l.b16 %v618
  %v718 = vunpack.c.h.b16 %v618
  %v719 = vunpack.c.l.b16 %v619
  %v720 = vunpack.c.h.b16 %v619
  %v721 = vunpack.c.l.b16 %v620
  %v722 = vunpack.c.h.b16 %v620
  %v723 = vunpack.c.l.b16 %v621
  %v724 = vunpack.c.h.b16 %v621
  %v725 = vunpack.c.l.b16 %v622
  %v726 = vunpack.c.h.b16 %v622
  %v727 = vunpack.c.l.b16 %v623
  %v728 = vunpack.c.h.b16 %v623
  %v729 = vunpack.c.l.b16 %v624
  %v730 = vunpack.c.h.b16 %v624
  %v731 = vunpack.c.l.b16 %v625
  %v732 = vunpack.c.h.b16 %v625
  %v733 = vunpack.c.l.b16 %v626
  %v734 = vunpack.c.h.b16 %v626
  %v735 = vunpack.c.l.b16 %v627
  %v736 = vunpack.c.h.b16 %v627
  %v737 = vunpack.c.l.b16 %v628
  %v738 = vunpack.c.h.b16 %v628
  %v739 = vunpack.c.l.b16 %v629
  %v740 = vunpack.c.h.b16 %v629
  %v741 = vunpack.c.l.b16 %v630
  %v742 = vunpack.c.h.b16 %v630
  %v743 = vunpack.c.l.b16 %v631
  %v744 = vunpack.c.h.b16 %v631
  %v745 = vunpack.c.l.b16 %v632
  %v746 = vunpack.c.h.b16 %v632
  %v747 = vunpack.c.l.b16 %v633
  %v748 = vunpack.c.h.b16 %v633
  %v749 = vunpack.c.l.b16 %v634
  %v750 = vunpack.c.h.b16 %v634
  %v751 = vunpack.c.l.b16 %v635
  %v752 = vunpack.c.h.b16 %v635
  %v753 = vunpack.c.l.b16 %v636
  %v754 = vunpack.c.h.b16 %v636
  %v755 = vunpack.c.l.b16 %v637
  %v756 = vunpack.c.h.b16 %v637
  %v757 = vpack.c.b16 %v697, %v693
  %v758 = vpack.c.b16 %v698, %v694
  %v759 = vpack.c.b16 %v699, %v695
  %v760 = vpack.c.b16 %v700, %v696
  %v761 = vpack.c.b16 %v705, %v701
  %v762 = vpack.c.b16 %v706, %v702
  %v763 = vpack.c.b16 %v707, %v703
  %v764 = vpack.c.b16 %v708, %v704
  %v765 = vpack.c.b16 %v713, %v709
  %v766 = vpack.c.b16 %v714, %v710
  %v767 = vpack.c.b16 %v715, %v711
  %v768 = vpack.c.b16 %v716, %v712
  %v769 = vpack.c.b16 %v721, %v717
  %v770 = vpack.c.b16 %v722, %v718
  %v771 = vpack.c.b16 %v723, %v719
  %v772 = vpack.c.b16 %v724, %v720
  %v773 = vpack.c.b16 %v729, %v725
  %v774 = vpack.c.b16 %v730, %v726
  %v775 = vpack.c.b16 %v731, %v727
  %v776 = vpack.c.b16 %v732, %v728
  %v777 = vpack.c.b16 %v737, %v733
  %v778 = vpack.c.b16 %v738, %v734
  %v779 = vpack.c.b16 %v739, %v735
  %v780 = vpack.c.b16 %v740, %v736
  %v781 = vpack.c.b16 %v745, %v741
  %v782 = vpack.c.b16 %v746, %v742
  %v783 = vpack.c.b16 %v747, %v743
  %v784 = vpack.c.b16 %v748, %v744
  %v785 = vpack.c.b16 %v753, %v749
  %v786 = vpack.c.b16 %v754, %v750
  %v787 = vpack.c.b16 %v755, %v751
  %v788 = vpack.c.b16 %v756, %v752
  %821 = vmatprep.subr.bf16.mxu0 %v758
  %822 = vmatpush1.bf16.msra.mxu0 %v757
  %823 = vmatprep.subr.bf16.mxu0 %v762
  %824 = vmatpush1.bf16.msra.mxu0 %v761
  %825 = vmatprep.subr.bf16.mxu0 %v766
  %826 = vmatpush1.bf16.msra.mxu0 %v765
  %827 = vmatprep.subr.bf16.mxu0 %v770
  %828 = vmatpush1.bf16.msra.mxu0 %v769
  %829 = vmatprep.subr.bf16.mxu0 %v774
  %830 = vmatpush1.bf16.msra.mxu0 %v773
  %831 = vmatprep.subr.bf16.mxu0 %v778
  %832 = vmatpush1.bf16.msra.mxu0 %v777
  %833 = vmatprep.subr.bf16.mxu0 %v782
  %834 = vmatpush1.bf16.msra.mxu0 %v781
  %835 = vmatprep.subr.bf16.mxu0 %v786
  %836 = vmatpush1.bf16.msra.mxu0 %v785
  %837 = vmatprep.subr.bf16.mxu0 0
  %838 = vmatpush1.bf16.msra.mxu0 0
  %839 = vmatprep.subr.bf16.mxu0 0
  %840 = vmatpush1.bf16.msra.mxu0 0
  %841 = vmatprep.subr.bf16.mxu0 0
  %842 = vmatpush1.bf16.msra.mxu0 0
  %843 = vmatprep.subr.bf16.mxu0 0
  %844 = vmatpush1.bf16.msra.mxu0 0
  %845 = vmatprep.subr.bf16.mxu0 0
  %846 = vmatpush1.bf16.msra.mxu0 0
  %847 = vmatprep.subr.bf16.mxu0 0
  %848 = vmatpush1.bf16.msra.mxu0 0
  %849 = vmatprep.subr.bf16.mxu0 0
  %850 = vmatpush1.bf16.msra.mxu0 0
  %851 = vmatprep.subr.bf16.mxu0 0
  %852 = vmatpush1.bf16.msra.mxu0 0
  %853 = vmatprep.mubr.bf16.mxu0 0
  %854 = vmatmul.mubr.bf16.gmra.mrb[0].mxu0 %v638
  %v855 = vpop.f32.mrb[0].mxu0
  %v856 = vadd.f32 %v644, %v855
  %v857 = vpop.f32.mrb[0].mxu0
  %v858 = vadd.f32 %v648, %v857
  %v859 = vpop.f32.mrb[0].mxu0
  %v860 = vadd.f32 %v644, %v859
  %v861 = vpop.f32.mrb[0].mxu0
  %v862 = vadd.f32 %v648, %v861
  %863 = vdwg.mxu0
  %864 = vmatprep.subr.bf16.mxu0 %v760
  %865 = vmatpush1.bf16.msra.mxu0 %v759
  %866 = vmatprep.subr.bf16.mxu0 %v764
  %867 = vmatpush1.bf16.msra.mxu0 %v763
  %868 = vmatprep.subr.bf16.mxu0 %v768
  %869 = vmatpush1.bf16.msra.mxu0 %v767
  %870 = vmatprep.subr.bf16.mxu0 %v772
  %871 = vmatpush1.bf16.msra.mxu0 %v771
  %872 = vmatprep.subr.bf16.mxu0 %v776
  %873 = vmatpush1.bf16.msra.mxu0 %v775
  %874 = vmatprep.subr.bf16.mxu0 %v780
  %875 = vmatpush1.bf16.msra.mxu0 %v779
  %876 = vmatprep.subr.bf16.mxu0 %v784
  %877 = vmatpush1.bf16.msra.mxu0 %v783
  %878 = vmatprep.subr.bf16.mxu0 %v788
  %879 = vmatpush1.bf16.msra.mxu0 %v787
  %880 = vmatprep.subr.bf16.mxu0 0
  %881 = vmatpush1.bf16.msra.mxu0 0
  %882 = vmatprep.subr.bf16.mxu0 0
  %883 = vmatpush1.bf16.msra.mxu0 0
  %884 = vmatprep.subr.bf16.mxu0 0
  %885 = vmatpush1.bf16.msra.mxu0 0
  %886 = vmatprep.subr.bf16.mxu0 0
  %887 = vmatpush1.bf16.msra.mxu0 0
  %888 = vmatprep.subr.bf16.mxu0 0
  %889 = vmatpush1.bf16.msra.mxu0 0
  %890 = vmatprep.subr.bf16.mxu0 0
  %891 = vmatpush1.bf16.msra.mxu0 0
  %892 = vmatprep.subr.bf16.mxu0 0
  %893 = vmatpush1.bf16.msra.mxu0 0
  %894 = vmatprep.subr.bf16.mxu0 0
  %895 = vmatpush1.bf16.msra.mxu0 0
  %896 = vmatprep.mubr.bf16.mxu0 0
  %897 = vmatmul.mubr.bf16.gmra.mrb[0].mxu0 %v638
  %v898 = vpop.f32.mrb[0].mxu0
  %v899 = vadd.f32 %v652, %v898
  %v900 = vpop.f32.mrb[0].mxu0
  %v901 = vadd.f32 %v656, %v900
  %v902 = vpop.f32.mrb[0].mxu0
  %v903 = vadd.f32 %v652, %v902
  %v904 = vpop.f32.mrb[0].mxu0
  %v905 = vadd.f32 %v656, %v904
  %906 = vdwg.mxu0
  %v907 = vpack.c.bf16 %v860, %v856
  %v908 = vpack.c.bf16 %v862, %v858
  %v909 = vpack.c.bf16 %v903, %v899
  %v910 = vpack.c.bf16 %v905, %v901
  %v911 = vmul.bf16 %v907, 1056980736
  %v912 = vmul.bf16 %v908, 1056980736
  %v913 = vmul.bf16 %v909, 1056980736
  %v914 = vmul.bf16 %v910, 1056980736
  %v915 = vmul.bf16 %v907, 1027030327
  %v916 = vmul.bf16 %v908, 1027030327
  %v917 = vmul.bf16 %v909, 1027030327
  %v918 = vmul.bf16 %v910, 1027030327
  %v919 = vmul.bf16 %v915, %v907
  %v920 = vmul.bf16 %v916, %v908
  %v921 = vmul.bf16 %v917, %v909
  %v922 = vmul.bf16 %v918, %v910
  %v923 = vmul.bf16 %v919, %v907
  %v924 = vmul.bf16 %v920, %v908
  %v925 = vmul.bf16 %v921, %v909
  %v926 = vmul.bf16 %v922, %v910
  %v927 = vadd.bf16 %v907, %v923
  %v928 = vadd.bf16 %v908, %v924
  %v929 = vadd.bf16 %v909, %v925
  %v930 = vadd.bf16 %v910, %v926
  %v931 = vmul.bf16 %v927, 1061961548
  %v932 = vmul.bf16 %v928, 1061961548
  %v933 = vmul.bf16 %v929, 1061961548
  %v934 = vmul.bf16 %v930, 1061961548
  %v935 = vtanh.bf16.pop %v931
  %v936 = vtanh.bf16.pop %v932
  %v937 = vtanh.bf16.pop %v933
  %v938 = vtanh.bf16.pop %v934
  %v939 = vadd.bf16 %v935, 1065369472
  %v940 = vadd.bf16 %v936, 1065369472
  %v941 = vadd.bf16 %v937, 1065369472
  %v942 = vadd.bf16 %v938, 1065369472
  %v943 = vmul.bf16 %v911, %v939
  %v944 = vmul.bf16 %v912, %v940
  %v945 = vmul.bf16 %v913, %v941
  %v946 = vmul.bf16 %v914, %v942
  %v947 = vld [vmem:[%s6] sm:$0xf]
  %v948 = vld [vmem:[%s6 + $0x4] sm:$0xf]
  %v949 = vld [vmem:[%s6 + $0x8] sm:$0xf]
  %v950 = vld [vmem:[%s6 + $0xc] sm:$0xf]
  %v951 = vld [vmem:[%s6 + $0x10] sm:$0xf]
  %v952 = vld [vmem:[%s6 + $0x14] sm:$0xf]
  %v953 = vld [vmem:[%s6 + $0x18] sm:$0xf]
  %v954 = vld [vmem:[%s6 + $0x1c] sm:$0xf]
  %v955 = vld [vmem:[%s6 + $0x20] sm:$0xf]
  %v956 = vld [vmem:[%s6 + $0x24] sm:$0xf]
  %v957 = vld [vmem:[%s6 + $0x28] sm:$0xf]
  %v958 = vld [vmem:[%s6 + $0x2c] sm:$0xf]
  %v959 = vld [vmem:[%s6 + $0x30] sm:$0xf]
  %v960 = vld [vmem:[%s6 + $0x34] sm:$0xf]
  %v961 = vld [vmem:[%s6 + $0x38] sm:$0xf]
  %v962 = vld [vmem:[%s6 + $0x3c] sm:$0xf]
  %v963 = vld [vmem:[%s6 + $0x40] sm:$0xf]
  %v964 = vld [vmem:[%s6 + $0x44] sm:$0xf]
  %v965 = vld [vmem:[%s6 + $0x48] sm:$0xf]
  %v966 = vld [vmem:[%s6 + $0x4c] sm:$0xf]
  %v967 = vld [vmem:[%s6 + $0x50] sm:$0xf]
  %v968 = vld [vmem:[%s6 + $0x54] sm:$0xf]
  %v969 = vld [vmem:[%s6 + $0x58] sm:$0xf]
  %v970 = vld [vmem:[%s6 + $0x5c] sm:$0xf]
  %v971 = vld [vmem:[%s6 + $0x60] sm:$0xf]
  %v972 = vld [vmem:[%s6 + $0x64] sm:$0xf]
  %v973 = vld [vmem:[%s6 + $0x68] sm:$0xf]
  %v974 = vld [vmem:[%s6 + $0x6c] sm:$0xf]
  %v975 = vld [vmem:[%s6 + $0x70] sm:$0xf]
  %v976 = vld [vmem:[%s6 + $0x74] sm:$0xf]
  %v977 = vld [vmem:[%s6 + $0x78] sm:$0xf]
  %v978 = vld [vmem:[%s6 + $0x7c] sm:$0xf]
  %v979 = vld [vmem:[%s6 + $0x80] sm:$0xf]
  %v980 = vld [vmem:[%s6 + $0x84] sm:$0xf]
  %v981 = vld [vmem:[%s6 + $0x88] sm:$0xf]
  %v982 = vld [vmem:[%s6 + $0x8c] sm:$0xf]
  %v983 = vld [vmem:[%s6 + $0x90] sm:$0xf]
  %v984 = vld [vmem:[%s6 + $0x94] sm:$0xf]
  %v985 = vld [vmem:[%s6 + $0x98] sm:$0xf]
  %v986 = vld [vmem:[%s6 + $0x9c] sm:$0xf]
  %v987 = vld [vmem:[%s6 + $0xa0] sm:$0xf]
  %v988 = vld [vmem:[%s6 + $0xa4] sm:$0xf]
  %v989 = vld [vmem:[%s6 + $0xa8] sm:$0xf]
  %v990 = vld [vmem:[%s6 + $0xac] sm:$0xf]
  %v991 = vld [vmem:[%s6 + $0xb0] sm:$0xf]
  %v992 = vld [vmem:[%s6 + $0xb4] sm:$0xf]
  %v993 = vld [vmem:[%s6 + $0xb8] sm:$0xf]
  %v994 = vld [vmem:[%s6 + $0xbc] sm:$0xf]
  %v995 = vld [vmem:[%s6 + $0xc0] sm:$0xf]
  %v996 = vld [vmem:[%s6 + $0xc4] sm:$0xf]
  %v997 = vld [vmem:[%s6 + $0xc8] sm:$0xf]
  %v998 = vld [vmem:[%s6 + $0xcc] sm:$0xf]
  %v999 = vld [vmem:[%s6 + $0xd0] sm:$0xf]
  %v1000 = vld [vmem:[%s6 + $0xd4] sm:$0xf]
  %v1001 = vld [vmem:[%s6 + $0xd8] sm:$0xf]
  %v1002 = vld [vmem:[%s6 + $0xdc] sm:$0xf]
  %v1003 = vld [vmem:[%s6 + $0xe0] sm:$0xf]
  %v1004 = vld [vmem:[%s6 + $0xe4] sm:$0xf]
  %v1005 = vld [vmem:[%s6 + $0xe8] sm:$0xf]
  %v1006 = vld [vmem:[%s6 + $0xec] sm:$0xf]
  %v1007 = vld [vmem:[%s6 + $0xf0] sm:$0xf]
  %v1008 = vld [vmem:[%s6 + $0xf4] sm:$0xf]
  %v1009 = vld [vmem:[%s6 + $0xf8] sm:$0xf]
  %v1010 = vld [vmem:[%s6 + $0xfc] sm:$0xf]
  %v1011 = vlaneseq
  %v1012 = vshrl.u32 %v1011, 7
  %v1013 = vsub.s32 3, %v1012
  %v1014 = vrot.slane %v458, %v1013
  %v1079 = vunpack.c.l.b16 %v947
  %v1080 = vunpack.c.l.b16 %v948
  %v1081 = vunpack.c.l.b16 %v949
  %v1082 = vunpack.c.l.b16 %v950
  %v1083 = vunpack.c.l.b16 %v951
  %v1084 = vunpack.c.l.b16 %v952
  %v1085 = vunpack.c.l.b16 %v953
  %v1086 = vunpack.c.l.b16 %v954
  %v1087 = vunpack.c.l.b16 %v955
  %v1088 = vunpack.c.l.b16 %v956
  %v1089 = vunpack.c.l.b16 %v957
  %v1090 = vunpack.c.l.b16 %v958
  %v1091 = vunpack.c.l.b16 %v959
  %v1092 = vunpack.c.l.b16 %v960
  %v1093 = vunpack.c.l.b16 %v961
  %v1094 = vunpack.c.l.b16 %v962
  %v1095 = vunpack.c.l.b16 %v963
  %v1096 = vunpack.c.l.b16 %v964
  %v1097 = vunpack.c.l.b16 %v965
  %v1098 = vunpack.c.l.b16 %v966
  %v1099 = vunpack.c.l.b16 %v967
  %v1100 = vunpack.c.l.b16 %v968
  %v1101 = vunpack.c.l.b16 %v969
  %v1102 = vunpack.c.l.b16 %v970
  %v1103 = vunpack.c.l.b16 %v971
  %v1104 = vunpack.c.l.b16 %v972
  %v1105 = vunpack.c.l.b16 %v973
  %v1106 = vunpack.c.l.b16 %v974
  %v1107 = vunpack.c.l.b16 %v975
  %v1108 = vunpack.c.l.b16 %v976
  %v1109 = vunpack.c.l.b16 %v977
  %v1110 = vunpack.c.l.b16 %v978
  %v1111 = vunpack.c.l.b16 %v979
  %v1112 = vunpack.c.l.b16 %v980
  %v1113 = vunpack.c.l.b16 %v981
  %v1114 = vunpack.c.l.b16 %v982
  %v1115 = vunpack.c.l.b16 %v983
  %v1116 = vunpack.c.l.b16 %v984
  %v1117 = vunpack.c.l.b16 %v985
  %v1118 = vunpack.c.l.b16 %v986
  %v1119 = vunpack.c.l.b16 %v987
  %v1120 = vunpack.c.l.b16 %v988
  %v1121 = vunpack.c.l.b16 %v989
  %v1122 = vunpack.c.l.b16 %v990
  %v1123 = vunpack.c.l.b16 %v991
  %v1124 = vunpack.c.l.b16 %v992
  %v1125 = vunpack.c.l.b16 %v993
  %v1126 = vunpack.c.l.b16 %v994
  %v1127 = vunpack.c.l.b16 %v995
  %v1128 = vunpack.c.l.b16 %v996
  %v1129 = vunpack.c.l.b16 %v997
  %v1130 = vunpack.c.l.b16 %v998
  %v1131 = vunpack.c.l.b16 %v999
  %v1132 = vunpack.c.l.b16 %v1000
  %v1133 = vunpack.c.l.b16 %v1001
  %v1134 = vunpack.c.l.b16 %v1002
  %v1135 = vunpack.c.l.b16 %v1003
  %v1136 = vunpack.c.l.b16 %v1004
  %v1137 = vunpack.c.l.b16 %v1005
  %v1138 = vunpack.c.l.b16 %v1006
  %v1139 = vunpack.c.l.b16 %v1007
  %v1140 = vunpack.c.l.b16 %v1008
  %v1141 = vunpack.c.l.b16 %v1009
  %v1142 = vunpack.c.l.b16 %v1010
  %v1143 = vpack.c.b16 %v1080, %v1079
  %v1144 = vpack.c.b16 %v1082, %v1081
  %v1145 = vpack.c.b16 %v1084, %v1083
  %v1146 = vpack.c.b16 %v1086, %v1085
  %v1147 = vpack.c.b16 %v1088, %v1087
  %v1148 = vpack.c.b16 %v1090, %v1089
  %v1149 = vpack.c.b16 %v1092, %v1091
  %v1150 = vpack.c.b16 %v1094, %v1093
  %v1151 = vpack.c.b16 %v1096, %v1095
  %v1152 = vpack.c.b16 %v1098, %v1097
  %v1153 = vpack.c.b16 %v1100, %v1099
  %v1154 = vpack.c.b16 %v1102, %v1101
  %v1155 = vpack.c.b16 %v1104, %v1103
  %v1156 = vpack.c.b16 %v1106, %v1105
  %v1157 = vpack.c.b16 %v1108, %v1107
  %v1158 = vpack.c.b16 %v1110, %v1109
  %v1159 = vpack.c.b16 %v1112, %v1111
  %v1160 = vpack.c.b16 %v1114, %v1113
  %v1161 = vpack.c.b16 %v1116, %v1115
  %v1162 = vpack.c.b16 %v1118, %v1117
  %v1163 = vpack.c.b16 %v1120, %v1119
  %v1164 = vpack.c.b16 %v1122, %v1121
  %v1165 = vpack.c.b16 %v1124, %v1123
  %v1166 = vpack.c.b16 %v1126, %v1125
  %v1167 = vpack.c.b16 %v1128, %v1127
  %v1168 = vpack.c.b16 %v1130, %v1129
  %v1169 = vpack.c.b16 %v1132, %v1131
  %v1170 = vpack.c.b16 %v1134, %v1133
  %v1171 = vpack.c.b16 %v1136, %v1135
  %v1172 = vpack.c.b16 %v1138, %v1137
  %v1173 = vpack.c.b16 %v1140, %v1139
  %v1174 = vpack.c.b16 %v1142, %v1141
  %1207 = vmatprep.subr.bf16.mxu0 0
  %1208 = vmatpush1.bf16.msra.mxu0 %v1143
  %1209 = vmatprep.subr.bf16.mxu0 0
  %1210 = vmatpush1.bf16.msra.mxu0 %v1144
  %1211 = vmatprep.subr.bf16.mxu0 0
  %1212 = vmatpush1.bf16.msra.mxu0 %v1145
  %1213 = vmatprep.subr.bf16.mxu0 0
  %1214 = vmatpush1.bf16.msra.mxu0 %v1146
  %1215 = vmatprep.subr.bf16.mxu0 0
  %1216 = vmatpush1.bf16.msra.mxu0 %v1147
  %1217 = vmatprep.subr.bf16.mxu0 0
  %1218 = vmatpush1.bf16.msra.mxu0 %v1148
  %1219 = vmatprep.subr.bf16.mxu0 0
  %1220 = vmatpush1.bf16.msra.mxu0 %v1149
  %1221 = vmatprep.subr.bf16.mxu0 0
  %1222 = vmatpush1.bf16.msra.mxu0 %v1150
  %1223 = vmatprep.subr.bf16.mxu0 0
  %1224 = vmatpush1.bf16.msra.mxu0 %v1151
  %1225 = vmatprep.subr.bf16.mxu0 0
  %1226 = vmatpush1.bf16.msra.mxu0 %v1152
  %1227 = vmatprep.subr.bf16.mxu0 0
  %1228 = vmatpush1.bf16.msra.mxu0 %v1153
  %1229 = vmatprep.subr.bf16.mxu0 0
  %1230 = vmatpush1.bf16.msra.mxu0 %v1154
  %1231 = vmatprep.subr.bf16.mxu0 0
  %1232 = vmatpush1.bf16.msra.mxu0 %v1155
  %1233 = vmatprep.subr.bf16.mxu0 0
  %1234 = vmatpush1.bf16.msra.mxu0 %v1156
  %1235 = vmatprep.subr.bf16.mxu0 0
  %1236 = vmatpush1.bf16.msra.mxu0 %v1157
  %1237 = vmatprep.subr.bf16.mxu0 0
  %1238 = vmatpush1.bf16.msra.mxu0 %v1158
  %1239 = vmatprep.mubr.bf16.mxu0 %v944
  %1240 = vmatmul.mubr.bf16.gmra.mrb[0].mxu0 %v943
  %v1241 = vpop.f32.mrb[0].mxu0
  %v1242 = vadd.f32 %v1014, %v1241
  %v1243 = vpop.f32.mrb[0].mxu0
  %v1244 = vpop.f32.mrb[0].mxu0
  %v1245 = vadd.f32 %v1014, %v1244
  %v1246 = vpop.f32.mrb[0].mxu0
  %1247 = vdwg.mxu0
  %1248 = vmatprep.subr.bf16.mxu0 0
  %1249 = vmatpush1.bf16.msra.mxu0 %v1159
  %1250 = vmatprep.subr.bf16.mxu0 0
  %1251 = vmatpush1.bf16.msra.mxu0 %v1160
  %1252 = vmatprep.subr.bf16.mxu0 0
  %1253 = vmatpush1.bf16.msra.mxu0 %v1161
  %1254 = vmatprep.subr.bf16.mxu0 0
  %1255 = vmatpush1.bf16.msra.mxu0 %v1162
  %1256 = vmatprep.subr.bf16.mxu0 0
  %1257 = vmatpush1.bf16.msra.mxu0 %v1163
  %1258 = vmatprep.subr.bf16.mxu0 0
  %1259 = vmatpush1.bf16.msra.mxu0 %v1164
  %1260 = vmatprep.subr.bf16.mxu0 0
  %1261 = vmatpush1.bf16.msra.mxu0 %v1165
  %1262 = vmatprep.subr.bf16.mxu0 0
  %1263 = vmatpush1.bf16.msra.mxu0 %v1166
  %1264 = vmatprep.subr.bf16.mxu0 0
  %1265 = vmatpush1.bf16.msra.mxu0 %v1167
  %1266 = vmatprep.subr.bf16.mxu0 0
  %1267 = vmatpush1.bf16.msra.mxu0 %v1168
  %1268 = vmatprep.subr.bf16.mxu0 0
  %1269 = vmatpush1.bf16.msra.mxu0 %v1169
  %1270 = vmatprep.subr.bf16.mxu0 0
  %1271 = vmatpush1.bf16.msra.mxu0 %v1170
  %1272 = vmatprep.subr.bf16.mxu0 0
  %1273 = vmatpush1.bf16.msra.mxu0 %v1171
  %1274 = vmatprep.subr.bf16.mxu0 0
  %1275 = vmatpush1.bf16.msra.mxu0 %v1172
  %1276 = vmatprep.subr.bf16.mxu0 0
  %1277 = vmatpush1.bf16.msra.mxu0 %v1173
  %1278 = vmatprep.subr.bf16.mxu0 0
  %1279 = vmatpush1.bf16.msra.mxu0 %v1174
  %1280 = vmatprep.mubr.bf16.mxu0 %v946
  %1281 = vmatmul.mubr.bf16.gmra.mrb[0].mxu0 %v945
  %v1282 = vpop.f32.mrb[0].mxu0
  %v1283 = vadd.f32 %v1242, %v1282
  %v1284 = vpop.f32.mrb[0].mxu0
  %v1285 = vpop.f32.mrb[0].mxu0
  %v1286 = vadd.f32 %v1245, %v1285
  %v1287 = vpop.f32.mrb[0].mxu0
  %1288 = vdwg.mxu0
  %v1289 = vadd.f32 %v604, %v1283
  %v1290 = vadd.f32 %v605, %v1286
  %1291 = vadd.xlane.f32.xlu0 %v1289
  %v1292 = vpop.xlane.xlu0 %1291
  %1293 = vadd.xlane.f32.xlu0 %v1290
  %v1294 = vpop.xlane.xlu0 %1293
  %v1295 = vmul.f32 %v1292, %v575
  %v1296 = vmul.f32 %v1294, %v575
  %v1297 = vsub.f32 %v1289, %v1295
  %v1298 = vsub.f32 %v1290, %v1296
  %v1299 = vmul.f32 %v1297, %v1297
  %v1300 = vmul.f32 %v1298, %v1298
  %1301 = vadd.xlane.f32.xlu0 %v1299
  %v1302 = vpop.xlane.xlu0 %1301
  %1303 = vadd.xlane.f32.xlu0 %v1300
  %v1304 = vpop.xlane.xlu0 %1303
  %v1305 = vmul.f32 %v1302, %v575
  %v1306 = vmul.f32 %v1304, %v575
  %v1307 = vadd.f32 %v1305, 1e-05
  %v1308 = vadd.f32 %v1306, 1e-05
  %v1309 = vrsqrt.pop %v1307
  %v1310 = vrsqrt.pop %v1308
  %v1311 = vmul.f32 %v1297, %v1309
  %v1312 = vmul.f32 %v1298, %v1310
  %v1313 = vlaneseq
  %v1314 = vshrl.u32 %v1313, 7
  %v1315 = vsub.s32 4, %v1314
  %v1316 = vrot.slane %v458, %v1315
  %v1317 = vmul.f32 %v1311, %v1316
  %v1318 = vmul.f32 %v1312, %v1316
  %v1319 = vlaneseq
  %v1320 = vshrl.u32 %v1319, 7
  %v1321 = vsub.s32 5, %v1320
  %v1322 = vrot.slane %v458, %v1321
  %v1323 = vadd.f32 %v1317, %v1322
  %v1324 = vadd.f32 %v1318, %v1322
  %s1325 = scalar_lea.vmem %s8, 8
  %v1326 = vld [vmem:[%s1325] sm:$0xff]
  %s1327 = scalar_lea.vmem %s4, 64
  %v1328 = vld [vmem:[%s1327] sm:$0xf]
  %v1329 = vld [vmem:[%s1327 + $0x4] sm:$0xf]
  %v1330 = vld [vmem:[%s1327 + $0x8] sm:$0xf]
  %v1331 = vld [vmem:[%s1327 + $0xc] sm:$0xf]
  %v1332 = vld [vmem:[%s1327 + $0x10] sm:$0xf]
  %v1333 = vld [vmem:[%s1327 + $0x14] sm:$0xf]
  %v1334 = vld [vmem:[%s1327 + $0x18] sm:$0xf]
  %v1335 = vld [vmem:[%s1327 + $0x1c] sm:$0xf]
  %v1336 = vld [vmem:[%s1327 + $0x20] sm:$0xf]
  %v1337 = vld [vmem:[%s1327 + $0x24] sm:$0xf]
  %v1338 = vld [vmem:[%s1327 + $0x28] sm:$0xf]
  %v1339 = vld [vmem:[%s1327 + $0x2c] sm:$0xf]
  %v1340 = vld [vmem:[%s1327 + $0x30] sm:$0xf]
  %v1341 = vld [vmem:[%s1327 + $0x34] sm:$0xf]
  %v1342 = vld [vmem:[%s1327 + $0x38] sm:$0xf]
  %v1343 = vld [vmem:[%s1327 + $0x3c] sm:$0xf]
  %v1344 = vpack.c.bf16 %v1324, %v1323
  %v1345 = vlaneseq
  %v1346 = vshrl.u32 %v1345, 7
  %v1347 = vsub.s32 0, %v1346
  %v1348 = vrot.slane %v1326, %v1347
  %v1365 = vunpack.c.l.b16 %v1328
  %v1366 = vunpack.c.l.b16 %v1329
  %v1367 = vunpack.c.l.b16 %v1330
  %v1368 = vunpack.c.l.b16 %v1331
  %v1369 = vunpack.c.l.b16 %v1332
  %v1370 = vunpack.c.l.b16 %v1333
  %v1371 = vunpack.c.l.b16 %v1334
  %v1372 = vunpack.c.l.b16 %v1335
  %v1373 = vunpack.c.l.b16 %v1336
  %v1374 = vunpack.c.l.b16 %v1337
  %v1375 = vunpack.c.l.b16 %v1338
  %v1376 = vunpack.c.l.b16 %v1339
  %v1377 = vunpack.c.l.b16 %v1340
  %v1378 = vunpack.c.l.b16 %v1341
  %v1379 = vunpack.c.l.b16 %v1342
  %v1380 = vunpack.c.l.b16 %v1343
  %v1381 = vpack.c.b16 %v1366, %v1365
  %v1382 = vpack.c.b16 %v1368, %v1367
  %v1383 = vpack.c.b16 %v1370, %v1369
  %v1384 = vpack.c.b16 %v1372, %v1371
  %v1385 = vpack.c.b16 %v1374, %v1373
  %v1386 = vpack.c.b16 %v1376, %v1375
  %v1387 = vpack.c.b16 %v1378, %v1377
  %v1388 = vpack.c.b16 %v1380, %v1379
  %1397 = vmatprep.subr.bf16.mxu0 0
  %1398 = vmatpush1.bf16.msra.mxu0 %v1381
  %1399 = vmatprep.subr.bf16.mxu0 0
  %1400 = vmatpush1.bf16.msra.mxu0 %v1382
  %1401 = vmatprep.subr.bf16.mxu0 0
  %1402 = vmatpush1.bf16.msra.mxu0 %v1383
  %1403 = vmatprep.subr.bf16.mxu0 0
  %1404 = vmatpush1.bf16.msra.mxu0 %v1384
  %1405 = vmatprep.subr.bf16.mxu0 0
  %1406 = vmatpush1.bf16.msra.mxu0 %v1385
  %1407 = vmatprep.subr.bf16.mxu0 0
  %1408 = vmatpush1.bf16.msra.mxu0 %v1386
  %1409 = vmatprep.subr.bf16.mxu0 0
  %1410 = vmatpush1.bf16.msra.mxu0 %v1387
  %1411 = vmatprep.subr.bf16.mxu0 0
  %1412 = vmatpush1.bf16.msra.mxu0 %v1388
  %1413 = vmatprep.subr.bf16.mxu0 0
  %1414 = vmatpush1.bf16.msra.mxu0 0
  %1415 = vmatprep.subr.bf16.mxu0 0
  %1416 = vmatpush1.bf16.msra.mxu0 0
  %1417 = vmatprep.subr.bf16.mxu0 0
  %1418 = vmatpush1.bf16.msra.mxu0 0
  %1419 = vmatprep.subr.bf16.mxu0 0
  %1420 = vmatpush1.bf16.msra.mxu0 0
  %1421 = vmatprep.subr.bf16.mxu0 0
  %1422 = vmatpush1.bf16.msra.mxu0 0
  %1423 = vmatprep.subr.bf16.mxu0 0
  %1424 = vmatpush1.bf16.msra.mxu0 0
  %1425 = vmatprep.subr.bf16.mxu0 0
  %1426 = vmatpush1.bf16.msra.mxu0 0
  %1427 = vmatprep.subr.bf16.mxu0 0
  %1428 = vmatpush1.bf16.msra.mxu0 0
  %1429 = vmatprep.mubr.bf16.mxu0 0
  %1430 = vmatmul.mubr.bf16.gmra.mrb[0].mxu0 %v1344
  %v1431 = vpop.f32.mrb[0].mxu0
  %v1432 = vadd.f32 %v1348, %v1431
  %v1433 = vpop.f32.mrb[0].mxu0
  %v1434 = vpop.f32.mrb[0].mxu0
  %v1435 = vadd.f32 %v1348, %v1434
  %v1436 = vpop.f32.mrb[0].mxu0
  %1437 = vdwg.mxu0
  %v1438 = vadd.f32 %v1323, %v1432
  %v1439 = vadd.f32 %v1324, %v1435
  %1440 = vadd.xlane.f32.xlu0 %v1438
  %v1441 = vpop.xlane.xlu0 %1440
  %1442 = vadd.xlane.f32.xlu0 %v1439
  %v1443 = vpop.xlane.xlu0 %1442
  %v1444 = vmul.f32 %v1441, %v575
  %v1445 = vmul.f32 %v1443, %v575
  %v1446 = vsub.f32 %v1438, %v1444
  %v1447 = vsub.f32 %v1439, %v1445
  %v1448 = vmul.f32 %v1446, %v1446
  %v1449 = vmul.f32 %v1447, %v1447
  %1450 = vadd.xlane.f32.xlu0 %v1448
  %v1451 = vpop.xlane.xlu0 %1450
  %1452 = vadd.xlane.f32.xlu0 %v1449
  %v1453 = vpop.xlane.xlu0 %1452
  %v1454 = vmul.f32 %v1451, %v575
  %v1455 = vmul.f32 %v1453, %v575
  %v1456 = vadd.f32 %v1454, 1e-05
  %v1457 = vadd.f32 %v1455, 1e-05
  %v1458 = vrsqrt.pop %v1456
  %v1459 = vrsqrt.pop %v1457
  %v1460 = vmul.f32 %v1446, %v1458
  %v1461 = vmul.f32 %v1447, %v1459
  %v1462 = vlaneseq
  %v1463 = vshrl.u32 %v1462, 7
  %v1464 = vsub.s32 1, %v1463
  %v1465 = vrot.slane %v1326, %v1464
  %v1466 = vmul.f32 %v1460, %v1465
  %v1467 = vmul.f32 %v1461, %v1465
  %v1468 = vlaneseq
  %v1469 = vshrl.u32 %v1468, 7
  %v1470 = vsub.s32 2, %v1469
  %v1471 = vrot.slane %v1326, %v1470
  %v1472 = vadd.f32 %v1466, %v1471
  %v1473 = vadd.f32 %v1467, %v1471
  %s1474 = scalar_lea.vmem %s5, 256
  %v1475 = vld [vmem:[%s1474] sm:$0xff]
  %v1476 = vld [vmem:[%s1474 + $0x8] sm:$0xff]
  %v1477 = vld [vmem:[%s1474 + $0x10] sm:$0xff]
  %v1478 = vld [vmem:[%s1474 + $0x18] sm:$0xff]
  %v1479 = vld [vmem:[%s1474 + $0x20] sm:$0xff]
  %v1480 = vld [vmem:[%s1474 + $0x28] sm:$0xff]
  %v1481 = vld [vmem:[%s1474 + $0x30] sm:$0xff]
  %v1482 = vld [vmem:[%s1474 + $0x38] sm:$0xff]
  %v1483 = vld [vmem:[%s1474 + $0x40] sm:$0xff]
  %v1484 = vld [vmem:[%s1474 + $0x48] sm:$0xff]
  %v1485 = vld [vmem:[%s1474 + $0x50] sm:$0xff]
  %v1486 = vld [vmem:[%s1474 + $0x58] sm:$0xff]
  %v1487 = vld [vmem:[%s1474 + $0x60] sm:$0xff]
  %v1488 = vld [vmem:[%s1474 + $0x68] sm:$0xff]
  %v1489 = vld [vmem:[%s1474 + $0x70] sm:$0xff]
  %v1490 = vld [vmem:[%s1474 + $0x78] sm:$0xff]
  %v1491 = vld [vmem:[%s1474 + $0x80] sm:$0xff]
  %v1492 = vld [vmem:[%s1474 + $0x88] sm:$0xff]
  %v1493 = vld [vmem:[%s1474 + $0x90] sm:$0xff]
  %v1494 = vld [vmem:[%s1474 + $0x98] sm:$0xff]
  %v1495 = vld [vmem:[%s1474 + $0xa0] sm:$0xff]
  %v1496 = vld [vmem:[%s1474 + $0xa8] sm:$0xff]
  %v1497 = vld [vmem:[%s1474 + $0xb0] sm:$0xff]
  %v1498 = vld [vmem:[%s1474 + $0xb8] sm:$0xff]
  %v1499 = vld [vmem:[%s1474 + $0xc0] sm:$0xff]
  %v1500 = vld [vmem:[%s1474 + $0xc8] sm:$0xff]
  %v1501 = vld [vmem:[%s1474 + $0xd0] sm:$0xff]
  %v1502 = vld [vmem:[%s1474 + $0xd8] sm:$0xff]
  %v1503 = vld [vmem:[%s1474 + $0xe0] sm:$0xff]
  %v1504 = vld [vmem:[%s1474 + $0xe8] sm:$0xff]
  %v1505 = vld [vmem:[%s1474 + $0xf0] sm:$0xff]
  %v1506 = vld [vmem:[%s1474 + $0xf8] sm:$0xff]
  %v1507 = vpack.c.bf16 %v1473, %v1472
  %s1508 = scalar_lea.vmem %s9, 4
  %v1509 = vld [vmem:[%s1508] sm:$0xf]
  %v1511 = vlaneseq
  %v1512 = vshrl.u32 %v1511, 7
  %v1513 = vsub.s32 0, %v1512
  %v1514 = vrot.slane %v1509, %v1513
  %v1515 = vlaneseq
  %v1516 = vshrl.u32 %v1515, 7
  %v1517 = vsub.s32 1, %v1516
  %v1518 = vrot.slane %v1509, %v1517
  %v1519 = vlaneseq
  %v1520 = vshrl.u32 %v1519, 7
  %v1521 = vsub.s32 2, %v1520
  %v1522 = vrot.slane %v1509, %v1521
  %v1523 = vlaneseq
  %v1524 = vshrl.u32 %v1523, 7
  %v1525 = vsub.s32 3, %v1524
  %v1526 = vrot.slane %v1509, %v1525
  %v1563 = vunpack.c.l.b16 %v1475
  %v1564 = vunpack.c.h.b16 %v1475
  %v1565 = vunpack.c.l.b16 %v1476
  %v1566 = vunpack.c.h.b16 %v1476
  %v1567 = vunpack.c.l.b16 %v1477
  %v1568 = vunpack.c.h.b16 %v1477
  %v1569 = vunpack.c.l.b16 %v1478
  %v1570 = vunpack.c.h.b16 %v1478
  %v1571 = vunpack.c.l.b16 %v1479
  %v1572 = vunpack.c.h.b16 %v1479
  %v1573 = vunpack.c.l.b16 %v1480
  %v1574 = vunpack.c.h.b16 %v1480
  %v1575 = vunpack.c.l.b16 %v1481
  %v1576 = vunpack.c.h.b16 %v1481
  %v1577 = vunpack.c.l.b16 %v1482
  %v1578 = vunpack.c.h.b16 %v1482
  %v1579 = vunpack.c.l.b16 %v1483
  %v1580 = vunpack.c.h.b16 %v1483
  %v1581 = vunpack.c.l.b16 %v1484
  %v1582 = vunpack.c.h.b16 %v1484
  %v1583 = vunpack.c.l.b16 %v1485
  %v1584 = vunpack.c.h.b16 %v1485
  %v1585 = vunpack.c.l.b16 %v1486
  %v1586 = vunpack.c.h.b16 %v1486
  %v1587 = vunpack.c.l.b16 %v1487
  %v1588 = vunpack.c.h.b16 %v1487
  %v1589 = vunpack.c.l.b16 %v1488
  %v1590 = vunpack.c.h.b16 %v1488
  %v1591 = vunpack.c.l.b16 %v1489
  %v1592 = vunpack.c.h.b16 %v1489
  %v1593 = vunpack.c.l.b16 %v1490
  %v1594 = vunpack.c.h.b16 %v1490
  %v1595 = vunpack.c.l.b16 %v1491
  %v1596 = vunpack.c.h.b16 %v1491
  %v1597 = vunpack.c.l.b16 %v1492
  %v1598 = vunpack.c.h.b16 %v1492
  %v1599 = vunpack.c.l.b16 %v1493
  %v1600 = vunpack.c.h.b16 %v1493
  %v1601 = vunpack.c.l.b16 %v1494
  %v1602 = vunpack.c.h.b16 %v1494
  %v1603 = vunpack.c.l.b16 %v1495
  %v1604 = vunpack.c.h.b16 %v1495
  %v1605 = vunpack.c.l.b16 %v1496
  %v1606 = vunpack.c.h.b16 %v1496
  %v1607 = vunpack.c.l.b16 %v1497
  %v1608 = vunpack.c.h.b16 %v1497
  %v1609 = vunpack.c.l.b16 %v1498
  %v1610 = vunpack.c.h.b16 %v1498
  %v1611 = vunpack.c.l.b16 %v1499
  %v1612 = vunpack.c.h.b16 %v1499
  %v1613 = vunpack.c.l.b16 %v1500
  %v1614 = vunpack.c.h.b16 %v1500
  %v1615 = vunpack.c.l.b16 %v1501
  %v1616 = vunpack.c.h.b16 %v1501
  %v1617 = vunpack.c.l.b16 %v1502
  %v1618 = vunpack.c.h.b16 %v1502
  %v1619 = vunpack.c.l.b16 %v1503
  %v1620 = vunpack.c.h.b16 %v1503
  %v1621 = vunpack.c.l.b16 %v1504
  %v1622 = vunpack.c.h.b16 %v1504
  %v1623 = vunpack.c.l.b16 %v1505
  %v1624 = vunpack.c.h.b16 %v1505
  %v1625 = vunpack.c.l.b16 %v1506
  %v1626 = vunpack.c.h.b16 %v1506
  %v1627 = vpack.c.b16 %v1567, %v1563
  %v1628 = vpack.c.b16 %v1568, %v1564
  %v1629 = vpack.c.b16 %v1569, %v1565
  %v1630 = vpack.c.b16 %v1570, %v1566
  %v1631 = vpack.c.b16 %v1575, %v1571
  %v1632 = vpack.c.b16 %v1576, %v1572
  %v1633 = vpack.c.b16 %v1577, %v1573
  %v1634 = vpack.c.b16 %v1578, %v1574
  %v1635 = vpack.c.b16 %v1583, %v1579
  %v1636 = vpack.c.b16 %v1584, %v1580
  %v1637 = vpack.c.b16 %v1585, %v1581
  %v1638 = vpack.c.b16 %v1586, %v1582
  %v1639 = vpack.c.b16 %v1591, %v1587
  %v1640 = vpack.c.b16 %v1592, %v1588
  %v1641 = vpack.c.b16 %v1593, %v1589
  %v1642 = vpack.c.b16 %v1594, %v1590
  %v1643 = vpack.c.b16 %v1599, %v1595
  %v1644 = vpack.c.b16 %v1600, %v1596
  %v1645 = vpack.c.b16 %v1601, %v1597
  %v1646 = vpack.c.b16 %v1602, %v1598
  %v1647 = vpack.c.b16 %v1607, %v1603
  %v1648 = vpack.c.b16 %v1608, %v1604
  %v1649 = vpack.c.b16 %v1609, %v1605
  %v1650 = vpack.c.b16 %v1610, %v1606
  %v1651 = vpack.c.b16 %v1615, %v1611
  %v1652 = vpack.c.b16 %v1616, %v1612
  %v1653 = vpack.c.b16 %v1617, %v1613
  %v1654 = vpack.c.b16 %v1618, %v1614
  %v1655 = vpack.c.b16 %v1623, %v1619
  %v1656 = vpack.c.b16 %v1624, %v1620
  %v1657 = vpack.c.b16 %v1625, %v1621
  %v1658 = vpack.c.b16 %v1626, %v1622
  %1691 = vmatprep.subr.bf16.mxu0 %v1628
  %1692 = vmatpush1.bf16.msra.mxu0 %v1627
  %1693 = vmatprep.subr.bf16.mxu0 %v1632
  %1694 = vmatpush1.bf16.msra.mxu0 %v1631
  %1695 = vmatprep.subr.bf16.mxu0 %v1636
  %1696 = vmatpush1.bf16.msra.mxu0 %v1635
  %1697 = vmatprep.subr.bf16.mxu0 %v1640
  %1698 = vmatpush1.bf16.msra.mxu0 %v1639
  %1699 = vmatprep.subr.bf16.mxu0 %v1644
  %1700 = vmatpush1.bf16.msra.mxu0 %v1643
  %1701 = vmatprep.subr.bf16.mxu0 %v1648
  %1702 = vmatpush1.bf16.msra.mxu0 %v1647
  %1703 = vmatprep.subr.bf16.mxu0 %v1652
  %1704 = vmatpush1.bf16.msra.mxu0 %v1651
  %1705 = vmatprep.subr.bf16.mxu0 %v1656
  %1706 = vmatpush1.bf16.msra.mxu0 %v1655
  %1707 = vmatprep.subr.bf16.mxu0 0
  %1708 = vmatpush1.bf16.msra.mxu0 0
  %1709 = vmatprep.subr.bf16.mxu0 0
  %1710 = vmatpush1.bf16.msra.mxu0 0
  %1711 = vmatprep.subr.bf16.mxu0 0
  %1712 = vmatpush1.bf16.msra.mxu0 0
  %1713 = vmatprep.subr.bf16.mxu0 0
  %1714 = vmatpush1.bf16.msra.mxu0 0
  %1715 = vmatprep.subr.bf16.mxu0 0
  %1716 = vmatpush1.bf16.msra.mxu0 0
  %1717 = vmatprep.subr.bf16.mxu0 0
  %1718 = vmatpush1.bf16.msra.mxu0 0
  %1719 = vmatprep.subr.bf16.mxu0 0
  %1720 = vmatpush1.bf16.msra.mxu0 0
  %1721 = vmatprep.subr.bf16.mxu0 0
  %1722 = vmatpush1.bf16.msra.mxu0 0
  %1723 = vmatprep.mubr.bf16.mxu0 0
  %1724 = vmatmul.mubr.bf16.gmra.mrb[0].mxu0 %v1507
  %v1725 = vpop.f32.mrb[0].mxu0
  %v1726 = vadd.f32 %v1514, %v1725
  %v1727 = vpop.f32.mrb[0].mxu0
  %v1728 = vadd.f32 %v1518, %v1727
  %v1729 = vpop.f32.mrb[0].mxu0
  %v1730 = vadd.f32 %v1514, %v1729
  %v1731 = vpop.f32.mrb[0].mxu0
  %v1732 = vadd.f32 %v1518, %v1731
  %1733 = vdwg.mxu0
  %1734 = vmatprep.subr.bf16.mxu0 %v1630
  %1735 = vmatpush1.bf16.msra.mxu0 %v1629
  %1736 = vmatprep.subr.bf16.mxu0 %v1634
  %1737 = vmatpush1.bf16.msra.mxu0 %v1633
  %1738 = vmatprep.subr.bf16.mxu0 %v1638
  %1739 = vmatpush1.bf16.msra.mxu0 %v1637
  %1740 = vmatprep.subr.bf16.mxu0 %v1642
  %1741 = vmatpush1.bf16.msra.mxu0 %v1641
  %1742 = vmatprep.subr.bf16.mxu0 %v1646
  %1743 = vmatpush1.bf16.msra.mxu0 %v1645
  %1744 = vmatprep.subr.bf16.mxu0 %v1650
  %1745 = vmatpush1.bf16.msra.mxu0 %v1649
  %1746 = vmatprep.subr.bf16.mxu0 %v1654
  %1747 = vmatpush1.bf16.msra.mxu0 %v1653
  %1748 = vmatprep.subr.bf16.mxu0 %v1658
  %1749 = vmatpush1.bf16.msra.mxu0 %v1657
  %1750 = vmatprep.subr.bf16.mxu0 0
  %1751 = vmatpush1.bf16.msra.mxu0 0
  %1752 = vmatprep.subr.bf16.mxu0 0
  %1753 = vmatpush1.bf16.msra.mxu0 0
  %1754 = vmatprep.subr.bf16.mxu0 0
  %1755 = vmatpush1.bf16.msra.mxu0 0
  %1756 = vmatprep.subr.bf16.mxu0 0
  %1757 = vmatpush1.bf16.msra.mxu0 0
  %1758 = vmatprep.subr.bf16.mxu0 0
  %1759 = vmatpush1.bf16.msra.mxu0 0
  %1760 = vmatprep.subr.bf16.mxu0 0
  %1761 = vmatpush1.bf16.msra.mxu0 0
  %1762 = vmatprep.subr.bf16.mxu0 0
  %1763 = vmatpush1.bf16.msra.mxu0 0
  %1764 = vmatprep.subr.bf16.mxu0 0
  %1765 = vmatpush1.bf16.msra.mxu0 0
  %1766 = vmatprep.mubr.bf16.mxu0 0
  %1767 = vmatmul.mubr.bf16.gmra.mrb[0].mxu0 %v1507
  %v1768 = vpop.f32.mrb[0].mxu0
  %v1769 = vadd.f32 %v1522, %v1768
  %v1770 = vpop.f32.mrb[0].mxu0
  %v1771 = vadd.f32 %v1526, %v1770
  %v1772 = vpop.f32.mrb[0].mxu0
  %v1773 = vadd.f32 %v1522, %v1772
  %v1774 = vpop.f32.mrb[0].mxu0
  %v1775 = vadd.f32 %v1526, %v1774
  %1776 = vdwg.mxu0
  %v1777 = vpack.c.bf16 %v1730, %v1726
  %v1778 = vpack.c.bf16 %v1732, %v1728
  %v1779 = vpack.c.bf16 %v1773, %v1769
  %v1780 = vpack.c.bf16 %v1775, %v1771
  %v1781 = vmul.bf16 %v1777, 1056980736
  %v1782 = vmul.bf16 %v1778, 1056980736
  %v1783 = vmul.bf16 %v1779, 1056980736
  %v1784 = vmul.bf16 %v1780, 1056980736
  %v1785 = vmul.bf16 %v1777, 1027030327
  %v1786 = vmul.bf16 %v1778, 1027030327
  %v1787 = vmul.bf16 %v1779, 1027030327
  %v1788 = vmul.bf16 %v1780, 1027030327
  %v1789 = vmul.bf16 %v1785, %v1777
  %v1790 = vmul.bf16 %v1786, %v1778
  %v1791 = vmul.bf16 %v1787, %v1779
  %v1792 = vmul.bf16 %v1788, %v1780
  %v1793 = vmul.bf16 %v1789, %v1777
  %v1794 = vmul.bf16 %v1790, %v1778
  %v1795 = vmul.bf16 %v1791, %v1779
  %v1796 = vmul.bf16 %v1792, %v1780
  %v1797 = vadd.bf16 %v1777, %v1793
  %v1798 = vadd.bf16 %v1778, %v1794
  %v1799 = vadd.bf16 %v1779, %v1795
  %v1800 = vadd.bf16 %v1780, %v1796
  %v1801 = vmul.bf16 %v1797, 1061961548
  %v1802 = vmul.bf16 %v1798, 1061961548
  %v1803 = vmul.bf16 %v1799, 1061961548
  %v1804 = vmul.bf16 %v1800, 1061961548
  %v1805 = vtanh.bf16.pop %v1801
  %v1806 = vtanh.bf16.pop %v1802
  %v1807 = vtanh.bf16.pop %v1803
  %v1808 = vtanh.bf16.pop %v1804
  %v1809 = vadd.bf16 %v1805, 1065369472
  %v1810 = vadd.bf16 %v1806, 1065369472
  %v1811 = vadd.bf16 %v1807, 1065369472
  %v1812 = vadd.bf16 %v1808, 1065369472
  %v1813 = vmul.bf16 %v1781, %v1809
  %v1814 = vmul.bf16 %v1782, %v1810
  %v1815 = vmul.bf16 %v1783, %v1811
  %v1816 = vmul.bf16 %v1784, %v1812
  %s1817 = scalar_lea.vmem %s6, 256
  %v1818 = vld [vmem:[%s1817] sm:$0xf]
  %v1819 = vld [vmem:[%s1817 + $0x4] sm:$0xf]
  %v1820 = vld [vmem:[%s1817 + $0x8] sm:$0xf]
  %v1821 = vld [vmem:[%s1817 + $0xc] sm:$0xf]
  %v1822 = vld [vmem:[%s1817 + $0x10] sm:$0xf]
  %v1823 = vld [vmem:[%s1817 + $0x14] sm:$0xf]
  %v1824 = vld [vmem:[%s1817 + $0x18] sm:$0xf]
  %v1825 = vld [vmem:[%s1817 + $0x1c] sm:$0xf]
  %v1826 = vld [vmem:[%s1817 + $0x20] sm:$0xf]
  %v1827 = vld [vmem:[%s1817 + $0x24] sm:$0xf]
  %v1828 = vld [vmem:[%s1817 + $0x28] sm:$0xf]
  %v1829 = vld [vmem:[%s1817 + $0x2c] sm:$0xf]
  %v1830 = vld [vmem:[%s1817 + $0x30] sm:$0xf]
  %v1831 = vld [vmem:[%s1817 + $0x34] sm:$0xf]
  %v1832 = vld [vmem:[%s1817 + $0x38] sm:$0xf]
  %v1833 = vld [vmem:[%s1817 + $0x3c] sm:$0xf]
  %v1834 = vld [vmem:[%s1817 + $0x40] sm:$0xf]
  %v1835 = vld [vmem:[%s1817 + $0x44] sm:$0xf]
  %v1836 = vld [vmem:[%s1817 + $0x48] sm:$0xf]
  %v1837 = vld [vmem:[%s1817 + $0x4c] sm:$0xf]
  %v1838 = vld [vmem:[%s1817 + $0x50] sm:$0xf]
  %v1839 = vld [vmem:[%s1817 + $0x54] sm:$0xf]
  %v1840 = vld [vmem:[%s1817 + $0x58] sm:$0xf]
  %v1841 = vld [vmem:[%s1817 + $0x5c] sm:$0xf]
  %v1842 = vld [vmem:[%s1817 + $0x60] sm:$0xf]
  %v1843 = vld [vmem:[%s1817 + $0x64] sm:$0xf]
  %v1844 = vld [vmem:[%s1817 + $0x68] sm:$0xf]
  %v1845 = vld [vmem:[%s1817 + $0x6c] sm:$0xf]
  %v1846 = vld [vmem:[%s1817 + $0x70] sm:$0xf]
  %v1847 = vld [vmem:[%s1817 + $0x74] sm:$0xf]
  %v1848 = vld [vmem:[%s1817 + $0x78] sm:$0xf]
  %v1849 = vld [vmem:[%s1817 + $0x7c] sm:$0xf]
  %v1850 = vld [vmem:[%s1817 + $0x80] sm:$0xf]
  %v1851 = vld [vmem:[%s1817 + $0x84] sm:$0xf]
  %v1852 = vld [vmem:[%s1817 + $0x88] sm:$0xf]
  %v1853 = vld [vmem:[%s1817 + $0x8c] sm:$0xf]
  %v1854 = vld [vmem:[%s1817 + $0x90] sm:$0xf]
  %v1855 = vld [vmem:[%s1817 + $0x94] sm:$0xf]
  %v1856 = vld [vmem:[%s1817 + $0x98] sm:$0xf]
  %v1857 = vld [vmem:[%s1817 + $0x9c] sm:$0xf]
  %v1858 = vld [vmem:[%s1817 + $0xa0] sm:$0xf]
  %v1859 = vld [vmem:[%s1817 + $0xa4] sm:$0xf]
  %v1860 = vld [vmem:[%s1817 + $0xa8] sm:$0xf]
  %v1861 = vld [vmem:[%s1817 + $0xac] sm:$0xf]
  %v1862 = vld [vmem:[%s1817 + $0xb0] sm:$0xf]
  %v1863 = vld [vmem:[%s1817 + $0xb4] sm:$0xf]
  %v1864 = vld [vmem:[%s1817 + $0xb8] sm:$0xf]
  %v1865 = vld [vmem:[%s1817 + $0xbc] sm:$0xf]
  %v1866 = vld [vmem:[%s1817 + $0xc0] sm:$0xf]
  %v1867 = vld [vmem:[%s1817 + $0xc4] sm:$0xf]
  %v1868 = vld [vmem:[%s1817 + $0xc8] sm:$0xf]
  %v1869 = vld [vmem:[%s1817 + $0xcc] sm:$0xf]
  %v1870 = vld [vmem:[%s1817 + $0xd0] sm:$0xf]
  %v1871 = vld [vmem:[%s1817 + $0xd4] sm:$0xf]
  %v1872 = vld [vmem:[%s1817 + $0xd8] sm:$0xf]
  %v1873 = vld [vmem:[%s1817 + $0xdc] sm:$0xf]
  %v1874 = vld [vmem:[%s1817 + $0xe0] sm:$0xf]
  %v1875 = vld [vmem:[%s1817 + $0xe4] sm:$0xf]
  %v1876 = vld [vmem:[%s1817 + $0xe8] sm:$0xf]
  %v1877 = vld [vmem:[%s1817 + $0xec] sm:$0xf]
  %v1878 = vld [vmem:[%s1817 + $0xf0] sm:$0xf]
  %v1879 = vld [vmem:[%s1817 + $0xf4] sm:$0xf]
  %v1880 = vld [vmem:[%s1817 + $0xf8] sm:$0xf]
  %v1881 = vld [vmem:[%s1817 + $0xfc] sm:$0xf]
  %v1882 = vlaneseq
  %v1883 = vshrl.u32 %v1882, 7
  %v1884 = vsub.s32 3, %v1883
  %v1885 = vrot.slane %v1326, %v1884
  %v1950 = vunpack.c.l.b16 %v1818
  %v1951 = vunpack.c.l.b16 %v1819
  %v1952 = vunpack.c.l.b16 %v1820
  %v1953 = vunpack.c.l.b16 %v1821
  %v1954 = vunpack.c.l.b16 %v1822
  %v1955 = vunpack.c.l.b16 %v1823
  %v1956 = vunpack.c.l.b16 %v1824
  %v1957 = vunpack.c.l.b16 %v1825
  %v1958 = vunpack.c.l.b16 %v1826
  %v1959 = vunpack.c.l.b16 %v1827
  %v1960 = vunpack.c.l.b16 %v1828
  %v1961 = vunpack.c.l.b16 %v1829
  %v1962 = vunpack.c.l.b16 %v1830
  %v1963 = vunpack.c.l.b16 %v1831
  %v1964 = vunpack.c.l.b16 %v1832
  %v1965 = vunpack.c.l.b16 %v1833
  %v1966 = vunpack.c.l.b16 %v1834
  %v1967 = vunpack.c.l.b16 %v1835
  %v1968 = vunpack.c.l.b16 %v1836
  %v1969 = vunpack.c.l.b16 %v1837
  %v1970 = vunpack.c.l.b16 %v1838
  %v1971 = vunpack.c.l.b16 %v1839
  %v1972 = vunpack.c.l.b16 %v1840
  %v1973 = vunpack.c.l.b16 %v1841
  %v1974 = vunpack.c.l.b16 %v1842
  %v1975 = vunpack.c.l.b16 %v1843
  %v1976 = vunpack.c.l.b16 %v1844
  %v1977 = vunpack.c.l.b16 %v1845
  %v1978 = vunpack.c.l.b16 %v1846
  %v1979 = vunpack.c.l.b16 %v1847
  %v1980 = vunpack.c.l.b16 %v1848
  %v1981 = vunpack.c.l.b16 %v1849
  %v1982 = vunpack.c.l.b16 %v1850
  %v1983 = vunpack.c.l.b16 %v1851
  %v1984 = vunpack.c.l.b16 %v1852
  %v1985 = vunpack.c.l.b16 %v1853
  %v1986 = vunpack.c.l.b16 %v1854
  %v1987 = vunpack.c.l.b16 %v1855
  %v1988 = vunpack.c.l.b16 %v1856
  %v1989 = vunpack.c.l.b16 %v1857
  %v1990 = vunpack.c.l.b16 %v1858
  %v1991 = vunpack.c.l.b16 %v1859
  %v1992 = vunpack.c.l.b16 %v1860
  %v1993 = vunpack.c.l.b16 %v1861
  %v1994 = vunpack.c.l.b16 %v1862
  %v1995 = vunpack.c.l.b16 %v1863
  %v1996 = vunpack.c.l.b16 %v1864
  %v1997 = vunpack.c.l.b16 %v1865
  %v1998 = vunpack.c.l.b16 %v1866
  %v1999 = vunpack.c.l.b16 %v1867
  %v2000 = vunpack.c.l.b16 %v1868
  %v2001 = vunpack.c.l.b16 %v1869
  %v2002 = vunpack.c.l.b16 %v1870
  %v2003 = vunpack.c.l.b16 %v1871
  %v2004 = vunpack.c.l.b16 %v1872
  %v2005 = vunpack.c.l.b16 %v1873
  %v2006 = vunpack.c.l.b16 %v1874
  %v2007 = vunpack.c.l.b16 %v1875
  %v2008 = vunpack.c.l.b16 %v1876
  %v2009 = vunpack.c.l.b16 %v1877
  %v2010 = vunpack.c.l.b16 %v1878
  %v2011 = vunpack.c.l.b16 %v1879
  %v2012 = vunpack.c.l.b16 %v1880
  %v2013 = vunpack.c.l.b16 %v1881
  %v2014 = vpack.c.b16 %v1951, %v1950
  %v2015 = vpack.c.b16 %v1953, %v1952
  %v2016 = vpack.c.b16 %v1955, %v1954
  %v2017 = vpack.c.b16 %v1957, %v1956
  %v2018 = vpack.c.b16 %v1959, %v1958
  %v2019 = vpack.c.b16 %v1961, %v1960
  %v2020 = vpack.c.b16 %v1963, %v1962
  %v2021 = vpack.c.b16 %v1965, %v1964
  %v2022 = vpack.c.b16 %v1967, %v1966
  %v2023 = vpack.c.b16 %v1969, %v1968
  %v2024 = vpack.c.b16 %v1971, %v1970
  %v2025 = vpack.c.b16 %v1973, %v1972
  %v2026 = vpack.c.b16 %v1975, %v1974
  %v2027 = vpack.c.b16 %v1977, %v1976
  %v2028 = vpack.c.b16 %v1979, %v1978
  %v2029 = vpack.c.b16 %v1981, %v1980
  %v2030 = vpack.c.b16 %v1983, %v1982
  %v2031 = vpack.c.b16 %v1985, %v1984
  %v2032 = vpack.c.b16 %v1987, %v1986
  %v2033 = vpack.c.b16 %v1989, %v1988
  %v2034 = vpack.c.b16 %v1991, %v1990
  %v2035 = vpack.c.b16 %v1993, %v1992
  %v2036 = vpack.c.b16 %v1995, %v1994
  %v2037 = vpack.c.b16 %v1997, %v1996
  %v2038 = vpack.c.b16 %v1999, %v1998
  %v2039 = vpack.c.b16 %v2001, %v2000
  %v2040 = vpack.c.b16 %v2003, %v2002
  %v2041 = vpack.c.b16 %v2005, %v2004
  %v2042 = vpack.c.b16 %v2007, %v2006
  %v2043 = vpack.c.b16 %v2009, %v2008
  %v2044 = vpack.c.b16 %v2011, %v2010
  %v2045 = vpack.c.b16 %v2013, %v2012
  %2078 = vmatprep.subr.bf16.mxu0 0
  %2079 = vmatpush1.bf16.msra.mxu0 %v2014
  %2080 = vmatprep.subr.bf16.mxu0 0
  %2081 = vmatpush1.bf16.msra.mxu0 %v2015
  %2082 = vmatprep.subr.bf16.mxu0 0
  %2083 = vmatpush1.bf16.msra.mxu0 %v2016
  %2084 = vmatprep.subr.bf16.mxu0 0
  %2085 = vmatpush1.bf16.msra.mxu0 %v2017
  %2086 = vmatprep.subr.bf16.mxu0 0
  %2087 = vmatpush1.bf16.msra.mxu0 %v2018
  %2088 = vmatprep.subr.bf16.mxu0 0
  %2089 = vmatpush1.bf16.msra.mxu0 %v2019
  %2090 = vmatprep.subr.bf16.mxu0 0
  %2091 = vmatpush1.bf16.msra.mxu0 %v2020
  %2092 = vmatprep.subr.bf16.mxu0 0
  %2093 = vmatpush1.bf16.msra.mxu0 %v2021
  %2094 = vmatprep.subr.bf16.mxu0 0
  %2095 = vmatpush1.bf16.msra.mxu0 %v2022
  %2096 = vmatprep.subr.bf16.mxu0 0
  %2097 = vmatpush1.bf16.msra.mxu0 %v2023
  %2098 = vmatprep.subr.bf16.mxu0 0
  %2099 = vmatpush1.bf16.msra.mxu0 %v2024
  %2100 = vmatprep.subr.bf16.mxu0 0
  %2101 = vmatpush1.bf16.msra.mxu0 %v2025
  %2102 = vmatprep.subr.bf16.mxu0 0
  %2103 = vmatpush1.bf16.msra.mxu0 %v2026
  %2104 = vmatprep.subr.bf16.mxu0 0
  %2105 = vmatpush1.bf16.msra.mxu0 %v2027
  %2106 = vmatprep.subr.bf16.mxu0 0
  %2107 = vmatpush1.bf16.msra.mxu0 %v2028
  %2108 = vmatprep.subr.bf16.mxu0 0
  %2109 = vmatpush1.bf16.msra.mxu0 %v2029
  %2110 = vmatprep.mubr.bf16.mxu0 %v1814
  %2111 = vmatmul.mubr.bf16.gmra.mrb[0].mxu0 %v1813
  %v2112 = vpop.f32.mrb[0].mxu0
  %v2113 = vadd.f32 %v1885, %v2112
  %v2114 = vpop.f32.mrb[0].mxu0
  %v2115 = vpop.f32.mrb[0].mxu0
  %v2116 = vadd.f32 %v1885, %v2115
  %v2117 = vpop.f32.mrb[0].mxu0
  %2118 = vdwg.mxu0
  %2119 = vmatprep.subr.bf16.mxu0 0
  %2120 = vmatpush1.bf16.msra.mxu0 %v2030
  %2121 = vmatprep.subr.bf16.mxu0 0
  %2122 = vmatpush1.bf16.msra.mxu0 %v2031
  %2123 = vmatprep.subr.bf16.mxu0 0
  %2124 = vmatpush1.bf16.msra.mxu0 %v2032
  %2125 = vmatprep.subr.bf16.mxu0 0
  %2126 = vmatpush1.bf16.msra.mxu0 %v2033
  %2127 = vmatprep.subr.bf16.mxu0 0
  %2128 = vmatpush1.bf16.msra.mxu0 %v2034
  %2129 = vmatprep.subr.bf16.mxu0 0
  %2130 = vmatpush1.bf16.msra.mxu0 %v2035
  %2131 = vmatprep.subr.bf16.mxu0 0
  %2132 = vmatpush1.bf16.msra.mxu0 %v2036
  %2133 = vmatprep.subr.bf16.mxu0 0
  %2134 = vmatpush1.bf16.msra.mxu0 %v2037
  %2135 = vmatprep.subr.bf16.mxu0 0
  %2136 = vmatpush1.bf16.msra.mxu0 %v2038
  %2137 = vmatprep.subr.bf16.mxu0 0
  %2138 = vmatpush1.bf16.msra.mxu0 %v2039
  %2139 = vmatprep.subr.bf16.mxu0 0
  %2140 = vmatpush1.bf16.msra.mxu0 %v2040
  %2141 = vmatprep.subr.bf16.mxu0 0
  %2142 = vmatpush1.bf16.msra.mxu0 %v2041
  %2143 = vmatprep.subr.bf16.mxu0 0
  %2144 = vmatpush1.bf16.msra.mxu0 %v2042
  %2145 = vmatprep.subr.bf16.mxu0 0
  %2146 = vmatpush1.bf16.msra.mxu0 %v2043
  %2147 = vmatprep.subr.bf16.mxu0 0
  %2148 = vmatpush1.bf16.msra.mxu0 %v2044
  %2149 = vmatprep.subr.bf16.mxu0 0
  %2150 = vmatpush1.bf16.msra.mxu0 %v2045
  %2151 = vmatprep.mubr.bf16.mxu0 %v1816
  %2152 = vmatmul.mubr.bf16.gmra.mrb[0].mxu0 %v1815
  %v2153 = vpop.f32.mrb[0].mxu0
  %v2154 = vadd.f32 %v2113, %v2153
  %v2155 = vpop.f32.mrb[0].mxu0
  %v2156 = vpop.f32.mrb[0].mxu0
  %v2157 = vadd.f32 %v2116, %v2156
  %v2158 = vpop.f32.mrb[0].mxu0
  %2159 = vdwg.mxu0
  %v2160 = vadd.f32 %v1472, %v2154
  %v2161 = vadd.f32 %v1473, %v2157
  %2162 = vadd.xlane.f32.xlu0 %v2160
  %v2163 = vpop.xlane.xlu0 %2162
  %2164 = vadd.xlane.f32.xlu0 %v2161
  %v2165 = vpop.xlane.xlu0 %2164
  %v2166 = vmul.f32 %v2163, %v575
  %v2167 = vmul.f32 %v2165, %v575
  %v2168 = vsub.f32 %v2160, %v2166
  %v2169 = vsub.f32 %v2161, %v2167
  %v2170 = vmul.f32 %v2168, %v2168
  %v2171 = vmul.f32 %v2169, %v2169
  %2172 = vadd.xlane.f32.xlu0 %v2170
  %v2173 = vpop.xlane.xlu0 %2172
  %2174 = vadd.xlane.f32.xlu0 %v2171
  %v2175 = vpop.xlane.xlu0 %2174
  %v2176 = vmul.f32 %v2173, %v575
  %v2177 = vmul.f32 %v2175, %v575
  %v2178 = vadd.f32 %v2176, 1e-05
  %v2179 = vadd.f32 %v2177, 1e-05
  %v2180 = vrsqrt.pop %v2178
  %v2181 = vrsqrt.pop %v2179
  %v2182 = vmul.f32 %v2168, %v2180
  %v2183 = vmul.f32 %v2169, %v2181
  %v2184 = vlaneseq
  %v2185 = vshrl.u32 %v2184, 7
  %v2186 = vsub.s32 4, %v2185
  %v2187 = vrot.slane %v1326, %v2186
  %v2188 = vmul.f32 %v2182, %v2187
  %v2189 = vmul.f32 %v2183, %v2187
  %v2190 = vlaneseq
  %v2191 = vshrl.u32 %v2190, 7
  %v2192 = vsub.s32 5, %v2191
  %v2193 = vrot.slane %v1326, %v2192
  %v2194 = vadd.f32 %v2188, %v2193
  %v2195 = vadd.f32 %v2189, %v2193
  %v2196 = vld [vmem:[%s7] sm:$0xf]
  %v2197 = vld [vmem:[%s7 + $0x4] sm:$0xf]
  %v2198 = vld [vmem:[%s7 + $0x8] sm:$0xf]
  %v2199 = vld [vmem:[%s7 + $0xc] sm:$0xf]
  %v2200 = vld [vmem:[%s7 + $0x10] sm:$0xf]
  %v2201 = vld [vmem:[%s7 + $0x14] sm:$0xf]
  %v2202 = vld [vmem:[%s7 + $0x18] sm:$0xf]
  %v2203 = vld [vmem:[%s7 + $0x1c] sm:$0xf]
  %v2204 = vld [vmem:[%s7 + $0x20] sm:$0xf]
  %v2205 = vld [vmem:[%s7 + $0x24] sm:$0xf]
  %v2206 = vld [vmem:[%s7 + $0x28] sm:$0xf]
  %v2207 = vld [vmem:[%s7 + $0x2c] sm:$0xf]
  %v2208 = vld [vmem:[%s7 + $0x30] sm:$0xf]
  %v2209 = vld [vmem:[%s7 + $0x34] sm:$0xf]
  %v2210 = vld [vmem:[%s7 + $0x38] sm:$0xf]
  %v2211 = vld [vmem:[%s7 + $0x3c] sm:$0xf]
  %v2212 = vpack.c.bf16 %v2195, %v2194
  %v2213 = vld [vmem:[%s11] sm:$0x1]
  %v2215 = vlaneseq
  %v2216 = vshrl.u32 %v2215, 7
  %v2217 = vsub.s32 0, %v2216
  %v2218 = vrot.slane %v2213, %v2217
  %v2236 = vunpack.c.l.b16 %v2196
  %v2237 = vunpack.c.l.b16 %v2197
  %v2238 = vunpack.c.l.b16 %v2198
  %v2239 = vunpack.c.l.b16 %v2199
  %v2240 = vunpack.c.l.b16 %v2200
  %v2241 = vunpack.c.l.b16 %v2201
  %v2242 = vunpack.c.l.b16 %v2202
  %v2243 = vunpack.c.l.b16 %v2203
  %v2244 = vunpack.c.l.b16 %v2204
  %v2245 = vunpack.c.l.b16 %v2205
  %v2246 = vunpack.c.l.b16 %v2206
  %v2247 = vunpack.c.l.b16 %v2207
  %v2248 = vunpack.c.l.b16 %v2208
  %v2249 = vunpack.c.l.b16 %v2209
  %v2250 = vunpack.c.l.b16 %v2210
  %v2251 = vunpack.c.l.b16 %v2211
  %v2252 = vpack.c.b16 %v2237, %v2236
  %v2253 = vpack.c.b16 %v2239, %v2238
  %v2254 = vpack.c.b16 %v2241, %v2240
  %v2255 = vpack.c.b16 %v2243, %v2242
  %v2256 = vpack.c.b16 %v2245, %v2244
  %v2257 = vpack.c.b16 %v2247, %v2246
  %v2258 = vpack.c.b16 %v2249, %v2248
  %v2259 = vpack.c.b16 %v2251, %v2250
  %2268 = vmatprep.subr.bf16.mxu0 0
  %2269 = vmatpush1.bf16.msra.mxu0 %v2252
  %2270 = vmatprep.subr.bf16.mxu0 0
  %2271 = vmatpush1.bf16.msra.mxu0 %v2253
  %2272 = vmatprep.subr.bf16.mxu0 0
  %2273 = vmatpush1.bf16.msra.mxu0 %v2254
  %2274 = vmatprep.subr.bf16.mxu0 0
  %2275 = vmatpush1.bf16.msra.mxu0 %v2255
  %2276 = vmatprep.subr.bf16.mxu0 0
  %2277 = vmatpush1.bf16.msra.mxu0 %v2256
  %2278 = vmatprep.subr.bf16.mxu0 0
  %2279 = vmatpush1.bf16.msra.mxu0 %v2257
  %2280 = vmatprep.subr.bf16.mxu0 0
  %2281 = vmatpush1.bf16.msra.mxu0 %v2258
  %2282 = vmatprep.subr.bf16.mxu0 0
  %2283 = vmatpush1.bf16.msra.mxu0 %v2259
  %2284 = vmatprep.subr.bf16.mxu0 0
  %2285 = vmatpush1.bf16.msra.mxu0 0
  %2286 = vmatprep.subr.bf16.mxu0 0
  %2287 = vmatpush1.bf16.msra.mxu0 0
  %2288 = vmatprep.subr.bf16.mxu0 0
  %2289 = vmatpush1.bf16.msra.mxu0 0
  %2290 = vmatprep.subr.bf16.mxu0 0
  %2291 = vmatpush1.bf16.msra.mxu0 0
  %2292 = vmatprep.subr.bf16.mxu0 0
  %2293 = vmatpush1.bf16.msra.mxu0 0
  %2294 = vmatprep.subr.bf16.mxu0 0
  %2295 = vmatpush1.bf16.msra.mxu0 0
  %2296 = vmatprep.subr.bf16.mxu0 0
  %2297 = vmatpush1.bf16.msra.mxu0 0
  %2298 = vmatprep.subr.bf16.mxu0 0
  %2299 = vmatpush1.bf16.msra.mxu0 0
  %2300 = vmatprep.mubr.bf16.mxu0 0
  %2301 = vmatmul.mubr.bf16.gmra.mrb[0].mxu0 %v2212
  %v2302 = vpop.f32.mrb[0].mxu0
  %v2303 = vadd.f32 %v2218, %v2302
  %v2304 = vpop.f32.mrb[0].mxu0
  %v2305 = vpop.f32.mrb[0].mxu0
  %v2306 = vadd.f32 %v2218, %v2305
  %v2307 = vpop.f32.mrb[0].mxu0
  %2308 = vdwg.mxu0
  %2309 = vst [vmem:[%s12] sm:$0xff] %v2303
  %2310 = vst [vmem:[%s12 + $0x8] sm:$0xff] %v2306
  // Predicated region
  $region50: #{forward.1} parent=0 // pred_check
    _
  $region51: #{forward.1} parent=0 // pred_check_branch
    %2312 = sbr.rel (0) target = $region53
  $region52: #{forward.1} parent=0 // pred_region
    _
  $region53: #{forward.1} parent=0 // pred_fallthru
    _
  // Predicated region
  $region54: #{forward.1} parent=0 // pred_check
    _
  $region55: #{forward.1} parent=0 // pred_check_branch
    %2314 = sbr.rel (0) target = $region57
  $region56: #{forward.1} parent=0 // pred_region
    _
  $region57: #{forward.1} parent=0 // pred_fallthru
    _

</llo_original>
